<compile_context>
chip_gen: v5e
topology: v5e:2x2
jax: 0.10.0
libtpu: 0.0.40
codegen_flags: <defaults>
</compile_context>

<pallas_src>
import jax
import jax.numpy as jnp
from jax.experimental import pallas as pl
from jax.experimental.pallas import tpu as pltpu


def _round_up(x, m):
    return ((x + m - 1) // m) * m


def _vmem_limit_bytes():
    """Generation-aware scoped-VMEM limit: ~80% of physical, capped, with a safe fallback."""
    cap = 64 * 1024 * 1024  # assume the smallest per-core VMEM (v7x) if the query fails
    try:
        info = pltpu.get_tpu_info()
        cap = int(getattr(info, "vmem_capacity_bytes", cap)) or cap
    except Exception:
        pass
    return max(32 * 1024 * 1024, min(int(cap * 0.8), 100 * 1024 * 1024))


def _step_vmem_bytes(B, C, Ck, tq, tk, attn_bytes, x_bytes):
    """Conservative per-grid-step VMEM estimate (double-buffered streams + scratch + temps)."""
    qT = 2 * B * tq * Ck * 2            # bf16 query block (changes with i only)
    kb = 2 * B * Ck * tk * 2            # bf16 key block
    vT = 2 * B * tk * C * 2             # bf16 value block (pre-transposed)
    xr = 2 * B * C * tq * x_bytes       # residual block
    ob = 2 * B * C * tq * x_bytes       # out block
    at = 2 * B * tq * tk * attn_bytes   # attention output block
    ac = B * tq * C * 4                 # f32 accumulator scratch
    tmp = 4 * B * tq * tk * 4           # e / p / att / cast temporaries (conservative)
    return qT + kb + vT + xr + ob + at + ac + tmp


def _pick_tiles(N, B, C, Ck, attn_bytes, x_bytes, budget):
    """Largest lane-dense (128-multiple) tiles whose per-step footprint fits the budget."""
    if N % 128 != 0:
        return N, N                     # block_shape == full array dims is always legal
    cands = [s for s in (512, 384, 256, 128) if N % s == 0]
    for tk in cands:                    # prefer a wide key tile: lane-dense attn stores, fewer steps
        for tq in cands:
            if _step_vmem_bytes(B, C, Ck, tq, tk, attn_bytes, x_bytes) <= budget:
                return tq, tk
    return 128, 128


def selfattn_kernel(qt_ref, k_ref, vt_ref, xres_ref, gamma_ref, out_ref, attn_ref, acc_ref):
    """One (query tile, key tile) grid step for ALL batches.

    qt_ref   : (B, TQ, Ck)  MXU dtype  -- query projection, pre-transposed (changes with i only)
    k_ref    : (B, Ck, TK)  MXU dtype  -- key projection (changes with k)
    vt_ref   : (B, TK, C)   MXU dtype  -- value projection, pre-transposed (changes with k)
    xres_ref : (B, C, TQ)   x dtype    -- residual tile of x (changes with i only)
    gamma_ref: (1,)         f32, SMEM
    out_ref  : (B, C, TQ)              -- resident across the key axis; written at the last key tile
    attn_ref : (B, TQ, TK)             -- straight (query, key) layout store, no transpose
    acc_ref  : (B, TQ, C)   f32 scratch accumulating out^T over key tiles
    """
    B = qt_ref.shape[0]
    kidx = pl.program_id(1)

    @pl.when(kidx == 0)
    def _():
        acc_ref[...] = jnp.zeros_like(acc_ref)

    # energy[b, i, j] = q[b,:,i] . k[b,:,j] on this (TQ, TK) tile -- plain batched A @ B.
    e = jnp.einsum("btc,bck->btk", qt_ref[...], k_ref[...],
                   preferred_element_type=jnp.float32)              # (B, TQ, TK) f32

    # Softmax ACROSS THE BATCH AXIS (legacy F.softmax implicit dim=0).  Per-(query, key) element,
    # which is exactly what makes key tiling legal without online-softmax state.
    if B == 2:
        # Two-way softmax == sigmoid: one exp pass instead of two (halves EUP transcendentals).
        a0 = pl.reciprocal(1.0 + jnp.exp(e[1] - e[0]), approx=True)
        att = jnp.stack([a0, 1.0 - a0], axis=0)
    else:
        m = jnp.max(e, axis=0, keepdims=True)
        p = jnp.exp(e - m)
        att = p * pl.reciprocal(jnp.sum(p, axis=0, keepdims=True), approx=True)

    # Straight lane-dense store (bf16 by default) -- the big (N, TQ) transpose is gone.
    attn_ref[...] = att.astype(attn_ref.dtype)

    # out^T accumulation: (TQ, TK) @ (TK, C) per batch, again plain A @ B on the MXU.
    acc_ref[...] += jnp.einsum("btk,bkc->btc", att.astype(vt_ref.dtype), vt_ref[...],
                               preferred_element_type=jnp.float32)

    @pl.when(kidx == pl.num_programs(1) - 1)
    def _():
        gamma = gamma_ref[0]
        for b in range(B):              # B small & static; (TQ, C) -> (C, TQ) is a tiny transpose
            out_ref[b] = (gamma * acc_ref[b].T + xres_ref[b]).astype(out_ref.dtype)


def self_attn_forward(x, wq, bq, wk, bk, wv, bv, gamma, *, tq=None, tk=None,
                      mxu_dtype=jnp.bfloat16, attn_dtype=jnp.bfloat16):
    """x: (B, C, W, H) NCHW.  Returns (out (B, C, W, H), attention (B, N, N)) with N = W*H."""
    B, C, W, H = x.shape
    N = W * H
    f32 = jnp.float32
    xf = x.reshape(B, C, N)

    wq = jnp.asarray(wq, f32).reshape(-1, C)
    wk = jnp.asarray(wk, f32).reshape(-1, C)
    wv = jnp.asarray(wv, f32).reshape(C, C)
    bq = jnp.asarray(bq, f32).reshape(-1)
    bk = jnp.asarray(bk, f32).reshape(-1)
    bv = jnp.asarray(bv, f32).reshape(-1)
    C8 = wq.shape[0]
    Ck = _round_up(max(C8, 1), 8)       # pad the low-rank q/k channel dim to a sublane multiple

    xf32 = xf.astype(f32)
    # 1x1-conv projections: cheap O(C^2*N) XLA matmuls, hoisted out of the O(N^2) kernel.
    q = jnp.einsum("oc,bcn->bon", wq, xf32) + bq[None, :, None]     # (B, C8, N)
    k = jnp.einsum("oc,bcn->bon", wk, xf32) + bk[None, :, None]     # (B, C8, N)
    v = jnp.einsum("oc,bcn->bon", wv, xf32) + bv[None, :, None]     # (B, C, N)

    # Pre-transpose / zero-pad so every in-kernel matmul is a plain (non-transposed) A @ B.
    qT = jnp.zeros((B, N, Ck), f32).at[:, :, :C8].set(jnp.transpose(q, (0, 2, 1)))
    kp = jnp.zeros((B, Ck, N), f32).at[:, :C8, :].set(k)
    vT = jnp.transpose(v, (0, 2, 1))                                # (B, N, C)

    attn_bytes = jnp.dtype(attn_dtype).itemsize
    x_bytes = jnp.dtype(x.dtype).itemsize
    vmem_limit = _vmem_limit_bytes()
    if tq is None or tk is None:
        atq, atk = _pick_tiles(N, B, C, Ck, attn_bytes, x_bytes, vmem_limit - 8 * 1024 * 1024)
        tq = atq if tq is None else tq
        tk = atk if tk is None else tk
    TQ, TK = tq, tk
    assert N % TQ == 0 and (TQ % 128 == 0 or TQ == N), "query tile must divide N (128-multiple)"
    assert N % TK == 0 and (TK % 128 == 0 or TK == N), "key tile must divide N (128-multiple)"

    gamma_arr = jnp.asarray(gamma, f32).reshape(1)
    grid = (N // TQ, N // TK)

    out_flat, attn = pl.pallas_call(
        selfattn_kernel,
        out_shape=(jax.ShapeDtypeStruct((B, C, N), x.dtype),
                   jax.ShapeDtypeStruct((B, N, N), attn_dtype)),
        grid=grid,
        in_specs=[
            pl.BlockSpec((B, TQ, Ck), lambda i, j: (0, i, 0)),   # query block (changes with i only)
            pl.BlockSpec((B, Ck, TK), lambda i, j: (0, 0, j)),   # key block
            pl.BlockSpec((B, TK, C), lambda i, j: (0, j, 0)),    # value block (pre-transposed)
            pl.BlockSpec((B, C, TQ), lambda i, j: (0, 0, i)),    # residual x tile (i only)
            pl.BlockSpec(memory_space=pltpu.MemorySpace.SMEM),   # gamma: scalar path, no VMEM tile
        ],
        out_specs=(
            # out block is constant across the key axis -> resident; written at the last key tile
            pl.BlockSpec((B, C, TQ), lambda i, j: (0, 0, i)),
            pl.BlockSpec((B, TQ, TK), lambda i, j: (0, i, j)),
        ),
        scratch_shapes=[pltpu.VMEM((B, TQ, C), jnp.float32)],
        compiler_params=pltpu.CompilerParams(
            # Query tiles are independent -> shardable across TensorCores; the key axis carries
            # the out accumulation -> "arbitrary".
            dimension_semantics=("parallel", "arbitrary"),
            vmem_limit_bytes=vmem_limit,
        ),
    )(qT.astype(mxu_dtype), kp.astype(mxu_dtype), vT.astype(mxu_dtype), xf, gamma_arr)

    return out_flat.reshape(B, C, W, H), attn


def ref_forward(x, wq, bq, wk, bk, wv, bv, gamma):
    """Pure-JAX reference mirroring the PyTorch forward exactly."""
    B, C, W, H = x.shape
    N = W * H
    xf = x.reshape(B, C, N)
    q = jnp.einsum("oc,bcn->bon", wq, xf) + bq[None, :, None]
    k = jnp.einsum("oc,bcn->bon", wk, xf) + bk[None, :, None]
    v = jnp.einsum("oc,bcn->bon", wv, xf) + bv[None, :, None]
    energy = jnp.einsum("boi,boj->bij", q, k)
    att = jax.nn.softmax(energy, axis=0)  # legacy F.softmax implicit dim for 3-D tensors = 0
    out = jnp.einsum("bcj,bij->bci", v, att)
    out = gamma * out + xf
    return out.reshape(B, C, W, H), att


if __name__ == "__main__":
    key = jax.random.PRNGKey(0)
    B, C, W, H = 2, 32, 16, 16          # N = W*H = 256
    C8 = C // 8
    ks = jax.random.split(key, 7)
    x = jax.random.normal(ks[0], (B, C, W, H), jnp.float32)
    # Parameter shapes follow the module __init__ (1x1 conv weights squeezed to 2-D).
    wq = 0.1 * jax.random.normal(ks[1], (C8, C), jnp.float32)
    bq = 0.1 * jax.random.normal(ks[2], (C8,), jnp.float32)
    wk = 0.1 * jax.random.normal(ks[3], (C8, C), jnp.float32)
    bk = 0.1 * jax.random.normal(ks[4], (C8,), jnp.float32)
    wv = 0.1 * jax.random.normal(ks[5], (C, C), jnp.float32)
    bv = 0.1 * jax.random.normal(ks[6], (C,), jnp.float32)
    # PyTorch initializes gamma to 0 (out == x trivially); use a nonzero value so the
    # attention path is exercised numerically.
    gamma = jnp.float32(0.5)

    out_r, attn_r = ref_forward(x, wq, bq, wk, bk, wv, bv, gamma)

    def rel_err(a, b):
        a = jnp.asarray(a, jnp.float32)
        b = jnp.asarray(b, jnp.float32)
        return float(jnp.max(jnp.abs(a - b)) / jnp.maximum(jnp.max(jnp.abs(b)), 1e-6))

    # 1) Forced 2x2 grid (128x128 tiles): exercises the key-axis accumulation + finalize path.
    out, attn = self_attn_forward(x, wq, bq, wk, bk, wv, bv, gamma, tq=128, tk=128)
    jax.block_until_ready((out, attn))
    assert out.shape == (B, C, W, H) and attn.shape == (B, W * H, W * H)
    # bf16 MXU operands / bf16 attention store + approx reciprocal -> scale-relative tolerances.
    e_attn = rel_err(attn, attn_r)
    e_out = rel_err(out, out_r)
    assert e_attn < 3e-2, f"attention mismatch: {e_attn}"
    assert e_out < 6e-2, f"output mismatch: {e_out}"

    # 2) Auto-picked (generation-aware) tiles + f32 attention output.
    out2, attn2 = self_attn_forward(x, wq, bq, wk, bk, wv, bv, gamma, attn_dtype=jnp.float32)
    jax.block_until_ready((out2, attn2))
    e_attn2 = rel_err(attn2, attn_r)
    e_out2 = rel_err(out2, out_r)
    assert e_attn2 < 3e-2, f"attention mismatch (auto tiles): {e_attn2}"
    assert e_out2 < 6e-2, f"output mismatch (auto tiles): {e_out2}"

    print("KERNEL_OK")
</pallas_src>

<mosaic_0001>
module attributes {stable_mosaic.version = 11 : i64} {
  func.func @selfattn_kernel(%arg0: i32, %arg1: i32, %arg2: memref<2x128x8xbf16, #tpu.memory_space<vmem>>, %arg3: memref<2x8x128xbf16, #tpu.memory_space<vmem>>, %arg4: memref<2x128x32xbf16, #tpu.memory_space<vmem>>, %arg5: memref<2x32x128xf32, #tpu.memory_space<vmem>>, %arg6: memref<1xf32, #tpu.memory_space<smem>>, %arg7: memref<2x32x128xf32, #tpu.memory_space<vmem>>, %arg8: memref<2x128x128xbf16, #tpu.memory_space<vmem>>, %arg9: memref<2x128x32xf32, #tpu.memory_space<vmem>>) attributes {dimension_semantics = [#tpu.dimension_semantics<parallel>, #tpu.dimension_semantics<arbitrary>], iteration_bounds = array<i64: 2, 2>, scalar_prefetch = 0 : i64, scratch_operands = 1 : i64, tpu.core_type = #tpu.core_type<tc>, window_params = [{transform_indices = @transform_0, window_bounds = array<i64: 2, 128, 8>}, {transform_indices = @transform_1, window_bounds = array<i64: 2, 8, 128>}, {transform_indices = @transform_2, window_bounds = array<i64: 2, 128, 32>}, {transform_indices = @transform_3, window_bounds = array<i64: 2, 32, 128>}, {transform_indices = @transform_4, window_bounds = array<i64: 1>}, {transform_indices = @transform_5, window_bounds = array<i64: 2, 32, 128>}, {transform_indices = @transform_6, window_bounds = array<i64: 2, 128, 128>}]} {
    %c0_i32 = arith.constant 0 : i32
    %0 = arith.cmpi eq, %arg1, %c0_i32 : i32
    %1 = arith.extui %0 : i1 to i32
    %c0_i32_0 = arith.constant 0 : i32
    %2 = arith.cmpi ne, %1, %c0_i32_0 : i32
    scf.if %2 {
      %cst_22 = arith.constant 0.000000e+00 : f32
      %31 = vector.broadcast %cst_22 : f32 to vector<2x128x32xf32>
      %c0_23 = arith.constant 0 : index
      %c0_24 = arith.constant 0 : index
      %c0_25 = arith.constant 0 : index
      %32 = vector.load %arg9[%c0_23, %c0_24, %c0_25] : memref<2x128x32xf32, #tpu.memory_space<vmem>>, vector<2x128x32xf32>
      tpu.vector_store %arg9[%c0_23, %c0_24, %c0_25], %31 {strides = array<i32>} : memref<2x128x32xf32, #tpu.memory_space<vmem>>, vector<2x128x32xf32>,
    } else {
    }
    %c0 = arith.constant 0 : index
    %c0_1 = arith.constant 0 : index
    %c0_2 = arith.constant 0 : index
    %3 = vector.load %arg2[%c0, %c0_1, %c0_2] : memref<2x128x8xbf16, #tpu.memory_space<vmem>>, vector<2x128x8xbf16>
    %c0_3 = arith.constant 0 : index
    %c0_4 = arith.constant 0 : index
    %c0_5 = arith.constant 0 : index
    %4 = vector.load %arg3[%c0_3, %c0_4, %c0_5] : memref<2x8x128xbf16, #tpu.memory_space<vmem>>, vector<2x8x128xbf16>
    "tpu.trace_start"() <{level = 10 : i32, message = "btc,bck->btk"}> : () -> ()
    %cst = arith.constant dense<0.000000e+00> : vector<2x128x128xf32>
    %5 = tpu.matmul %3, %4, %cst {dimension_numbers = #tpu.dot_dimension_numbers<[2], [1], [1], [2], [0, 0, 0, 1, 1, 2], [0], [0]>} : vector<2x128x8xbf16>, vector<2x8x128xbf16>, vector<2x128x128xf32> -> vector<2x128x128xf32>
    "tpu.trace_stop"() : () -> ()
    %6 = vector.extract_strided_slice %5 {offsets = [1, 0, 0], sizes = [1, 128, 128], strides = [1, 1, 1]} : vector<2x128x128xf32> to vector<1x128x128xf32>
    %7 = vector.shape_cast %6 : vector<1x128x128xf32> to vector<128x128xf32>
    %8 = vector.extract_strided_slice %5 {offsets = [0, 0, 0], sizes = [1, 128, 128], strides = [1, 1, 1]} : vector<2x128x128xf32> to vector<1x128x128xf32>
    %9 = vector.shape_cast %8 : vector<1x128x128xf32> to vector<128x128xf32>
    %10 = arith.subf %7, %9 : vector<128x128xf32>
    %11 = math.exp %10 : vector<128x128xf32>
    %cst_6 = arith.constant 1.000000e+00 : f32
    %12 = vector.broadcast %cst_6 : f32 to vector<128x128xf32>
    %13 = arith.addf %12, %11 : vector<128x128xf32>
    %14 = tpu.reciprocal %13 {approx = true} : vector<128x128xf32> -> vector<128x128xf32>
    %cst_7 = arith.constant 1.000000e+00 : f32
    %15 = vector.broadcast %cst_7 : f32 to vector<128x128xf32>
    %16 = arith.subf %15, %14 : vector<128x128xf32>
    %17 = vector.shape_cast %14 : vector<128x128xf32> to vector<1x128x128xf32>
    %18 = vector.shape_cast %16 : vector<128x128xf32> to vector<1x128x128xf32>
    %19 = tpu.concatenate %17, %18 in 0 : vector<1x128x128xf32>, vector<1x128x128xf32> -> vector<2x128x128xf32>
    %20 = arith.truncf %19 : vector<2x128x128xf32> to vector<2x128x128xbf16>
    %c0_8 = arith.constant 0 : index
    %c0_9 = arith.constant 0 : index
    %c0_10 = arith.constant 0 : index
    %21 = vector.load %arg8[%c0_8, %c0_9, %c0_10] : memref<2x128x128xbf16, #tpu.memory_space<vmem>>, vector<2x128x128xbf16>
    tpu.vector_store %arg8[%c0_8, %c0_9, %c0_10], %20 {strides = array<i32>} : memref<2x128x128xbf16, #tpu.memory_space<vmem>>, vector<2x128x128xbf16>,
    %c0_11 = arith.constant 0 : index
    %c0_12 = arith.constant 0 : index
    %c0_13 = arith.constant 0 : index
    %22 = vector.load %arg9[%c0_11, %c0_12, %c0_13] : memref<2x128x32xf32, #tpu.memory_space<vmem>>, vector<2x128x32xf32>
    %23 = arith.truncf %19 : vector<2x128x128xf32> to vector<2x128x128xbf16>
    %c0_14 = arith.constant 0 : index
    %c0_15 = arith.constant 0 : index
    %c0_16 = arith.constant 0 : index
    %24 = vector.load %arg4[%c0_14, %c0_15, %c0_16] : memref<2x128x32xbf16, #tpu.memory_space<vmem>>, vector<2x128x32xbf16>
    "tpu.trace_start"() <{level = 10 : i32, message = "btk,bkc->btc"}> : () -> ()
    %cst_17 = arith.constant dense<0.000000e+00> : vector<2x128x32xf32>
    %25 = tpu.matmul %23, %24, %cst_17 {dimension_numbers = #tpu.dot_dimension_numbers<[2], [1], [1], [2], [0, 0, 0, 1, 1, 2], [0], [0]>} : vector<2x128x128xbf16>, vector<2x128x32xbf16>, vector<2x128x32xf32> -> vector<2x128x32xf32>
    "tpu.trace_stop"() : () -> ()
    %26 = arith.addf %22, %25 : vector<2x128x32xf32>
    %c0_18 = arith.constant 0 : index
    %c0_19 = arith.constant 0 : index
    %c0_20 = arith.constant 0 : index
    %27 = vector.load %arg9[%c0_18, %c0_19, %c0_20] : memref<2x128x32xf32, #tpu.memory_space<vmem>>, vector<2x128x32xf32>
    tpu.vector_store %arg9[%c0_18, %c0_19, %c0_20], %26 {strides = array<i32>} : memref<2x128x32xf32, #tpu.memory_space<vmem>>, vector<2x128x32xf32>,
    %c1_i32 = arith.constant 1 : i32
    %28 = arith.cmpi eq, %arg1, %c1_i32 : i32
    %29 = arith.extui %28 : i1 to i32
    %c0_i32_21 = arith.constant 0 : i32
    %30 = arith.cmpi ne, %29, %c0_i32_21 : i32
    scf.if %30 {
      %c0_22 = arith.constant 0 : index
      %31 = memref.load %arg6[%c0_22] : memref<1xf32, #tpu.memory_space<smem>>
      %c0_23 = arith.constant 0 : index
      %c0_24 = arith.constant 0 : index
      %c0_25 = arith.constant 0 : index
      %32 = vector.load %arg9[%c0_23, %c0_24, %c0_25] : memref<2x128x32xf32, #tpu.memory_space<vmem>>, vector<1x128x32xf32>
      %33 = vector.shape_cast %32 : vector<1x128x32xf32> to vector<128x32xf32>
      %34 = tpu.transpose %33, [1, 0] : vector<128x32xf32> -> vector<32x128xf32>
      %35 = vector.broadcast %31 : f32 to vector<32x128xf32>
      %36 = arith.mulf %35, %34 : vector<32x128xf32>
      %c0_26 = arith.constant 0 : index
      %c0_27 = arith.constant 0 : index
      %c0_28 = arith.constant 0 : index
      %37 = vector.load %arg5[%c0_26, %c0_27, %c0_28] : memref<2x32x128xf32, #tpu.memory_space<vmem>>, vector<1x32x128xf32>
      %38 = vector.shape_cast %37 : vector<1x32x128xf32> to vector<32x128xf32>
      %39 = arith.addf %36, %38 : vector<32x128xf32>
      %c0_29 = arith.constant 0 : index
      %c0_30 = arith.constant 0 : index
      %c0_31 = arith.constant 0 : index
      %40 = vector.load %arg7[%c0_29, %c0_30, %c0_31] : memref<2x32x128xf32, #tpu.memory_space<vmem>>, vector<1x32x128xf32>
      %41 = vector.shape_cast %40 : vector<1x32x128xf32> to vector<32x128xf32>
      %42 = vector.shape_cast %39 : vector<32x128xf32> to vector<1x32x128xf32>
      tpu.vector_store %arg7[%c0_29, %c0_30, %c0_31], %42 {strides = array<i32>} : memref<2x32x128xf32, #tpu.memory_space<vmem>>, vector<1x32x128xf32>,
      %c1 = arith.constant 1 : index
      %c0_32 = arith.constant 0 : index
      %c0_33 = arith.constant 0 : index
      %43 = vector.load %arg9[%c1, %c0_32, %c0_33] : memref<2x128x32xf32, #tpu.memory_space<vmem>>, vector<1x128x32xf32>
      %44 = vector.shape_cast %43 : vector<1x128x32xf32> to vector<128x32xf32>
      %45 = tpu.transpose %44, [1, 0] : vector<128x32xf32> -> vector<32x128xf32>
      %46 = vector.broadcast %31 : f32 to vector<32x128xf32>
      %47 = arith.mulf %46, %45 : vector<32x128xf32>
      %c1_34 = arith.constant 1 : index
      %c0_35 = arith.constant 0 : index
      %c0_36 = arith.constant 0 : index
      %48 = vector.load %arg5[%c1_34, %c0_35, %c0_36] : memref<2x32x128xf32, #tpu.memory_space<vmem>>, vector<1x32x128xf32>
      %49 = vector.shape_cast %48 : vector<1x32x128xf32> to vector<32x128xf32>
      %50 = arith.addf %47, %49 : vector<32x128xf32>
      %c1_37 = arith.constant 1 : index
      %c0_38 = arith.constant 0 : index
      %c0_39 = arith.constant 0 : index
      %51 = vector.load %arg7[%c1_37, %c0_38, %c0_39] : memref<2x32x128xf32, #tpu.memory_space<vmem>>, vector<1x32x128xf32>
      %52 = vector.shape_cast %51 : vector<1x32x128xf32> to vector<32x128xf32>
      %53 = vector.shape_cast %50 : vector<32x128xf32> to vector<1x32x128xf32>
      tpu.vector_store %arg7[%c1_37, %c0_38, %c0_39], %53 {strides = array<i32>} : memref<2x32x128xf32, #tpu.memory_space<vmem>>, vector<1x32x128xf32>,
    } else {
    }
    return
  }
  func.func @transform_0(%arg0: i32, %arg1: i32) -> (i32, i32, i32) {
    %c0_i32 = arith.constant 0 : i32
    %c0_i32_0 = arith.constant 0 : i32
    %c0_i32_1 = arith.constant 0 : i32
    return %c0_i32, %arg0, %c0_i32_0 : i32, i32, i32
  }
  func.func @transform_1(%arg0: i32, %arg1: i32) -> (i32, i32, i32) {
    %c0_i32 = arith.constant 0 : i32
    %c0_i32_0 = arith.constant 0 : i32
    %c0_i32_1 = arith.constant 0 : i32
    return %c0_i32, %c0_i32_0, %arg1 : i32, i32, i32
  }
  func.func @transform_2(%arg0: i32, %arg1: i32) -> (i32, i32, i32) {
    %c0_i32 = arith.constant 0 : i32
    %c0_i32_0 = arith.constant 0 : i32
    %c0_i32_1 = arith.constant 0 : i32
    return %c0_i32, %arg1, %c0_i32_0 : i32, i32, i32
  }
  func.func @transform_3(%arg0: i32, %arg1: i32) -> (i32, i32, i32) {
    %c0_i32 = arith.constant 0 : i32
    %c0_i32_0 = arith.constant 0 : i32
    %c0_i32_1 = arith.constant 0 : i32
    return %c0_i32, %c0_i32_0, %arg0 : i32, i32, i32
  }
  func.func @transform_4(%arg0: i32, %arg1: i32) -> i32 {
    %c0_i32 = arith.constant 0 : i32
    %c0_i32_0 = arith.constant 0 : i32
    return %c0_i32 : i32
  }
  func.func @transform_5(%arg0: i32, %arg1: i32) -> (i32, i32, i32) {
    %c0_i32 = arith.constant 0 : i32
    %c0_i32_0 = arith.constant 0 : i32
    %c0_i32_1 = arith.constant 0 : i32
    return %c0_i32, %c0_i32_0, %arg0 : i32, i32, i32
  }
  func.func @transform_6(%arg0: i32, %arg1: i32) -> (i32, i32, i32) {
    %c0_i32 = arith.constant 0 : i32
    %c0_i32_0 = arith.constant 0 : i32
    return %c0_i32, %arg0, %arg1 : i32, i32, i32
  }
}

</mosaic_0001>

<llo_original>
// kernel: tpu_custom_call.1
$region0: #{tpu_custom_call.1}
  #allocation0 [shape = 'u32[]', space=smem, size = 0x4, offset = 0x4, fixed_abs, tag = 'smem constant byte address 0x4 - core index']
  #allocation1 [shape = 'u32[72,128]{1,0:T(1,128)}', space=vmem, size = 0x9000, scoped, tag = 'internal scratch']
  #allocation2 [shape = 'f32[2,128,32]{2,1,0:T(8,128)}', space=vmem, size = 0x20000, scoped, tag = 'scratch operand']
  #allocation3 [shape = 'f32[1]{0:T(128)S(6)}', space=smem, size = 0x200, scoped, tag = 'scoped memory for tpu_custom_call.1']
  #allocation12 [shape = 's32[]', space=sflag, size = 0x4, offset = 0, fixed_abs, tag = 'sflag constant byte address 0x0 - dummy sync flag']
  %s0 = inlined_call_operand.vmem [shape: bf16[2,256,8], index: 0, kind: input, shape index: {}]
  %s1 = inlined_call_operand.vmem [shape: bf16[2,8,256], index: 1, kind: input, shape index: {}]
  %s2 = inlined_call_operand.vmem [shape: bf16[2,256,32], index: 2, kind: input, shape index: {}]
  %s3 = inlined_call_operand.vmem [shape: f32[2,32,256], index: 3, kind: input, shape index: {}]
  %s4 = inlined_call_operand.<no memory space> [shape: f32[1], index: 4, kind: input, shape index: {}]
  %s5 = inlined_call_operand.hbm [shape: f32[2,32,256], index: 5, kind: output, shape index: {0}]
  %s6 = inlined_call_operand.hbm [shape: bf16[2,256,256], index: 6, kind: output, shape index: {1}]
  %7 = xla_tuple %s5, %s6
  %s8 = sld [smem:[#allocation0]]
  $region230: #{tpu_custom_call.1} parent=0
    _
  %s10 = ssub.s32 1, %s8
  %s11 = scalar_select 0, %s10, %s8
  %12 = sst [smem:[#allocation3]] %s4
  $region1: #{tpu_custom_call.1} parent=0
    #allocation4 [shape = 'u8[131072]{0}', space=vmem, size = 0x20000, scoped, tag = 'input window, operand 0']
    #allocation5 [shape = 'u8[8192]{0}', space=vmem, size = 0x2000, scoped, tag = 'input window, operand 1']
    #allocation6 [shape = 'u8[131072]{0}', space=vmem, size = 0x20000, scoped, tag = 'input window, operand 2']
    #allocation7 [shape = 'u8[65536]{0}', space=vmem, size = 0x10000, scoped, tag = 'input window, operand 3']
    #allocation8 [shape = 'u8[65536]{0}', space=vmem, size = 0x10000, scoped, tag = 'output window, operand 0']
    #allocation9 [shape = 's32[2]{0}', space=sflag, size = 0x8, scoped, tag = 'scoped memory for tpu_custom_call.1']
    #allocation10 [shape = 'u8[131072]{0}', space=vmem, size = 0x20000, scoped, tag = 'output window, operand 1']
    #allocation11 [shape = 's32[2]{0}', space=sflag, size = 0x8, scoped, tag = 'scoped memory for tpu_custom_call.1']
    %13 = vsyncpa [#allocation9], 0
    %s14 = scalar_lea.sflag [#allocation9], 1
    %15 = vsyncpa %s14, 0
    %16 = vsyncpa [#allocation11], 0
    %s17 = scalar_lea.sflag [#allocation11], 1
    %18 = vsyncpa %s17, 0
    loop: start=0, step=1, limit=6
    $region2: #{tpu_custom_call.1} parent=1 // loop_pre_header
      _
    $region3: #{tpu_custom_call.1} parent=1 // loop_header
      %s20 = sphi 0, %s24
      %p21 = scmp.ge.s32.totalorder %s20, 6
      %s27 = sphi 0, %s39
      %s28 = sphi 0, %s35
      %s29 = sphi 0, %s27
      %s30 = sphi 0, %s28
      %s31 = sphi 0, %s29
      %s32 = sphi 0, %s30
      %s42 = sphi 0, %s44
      %s45 = sphi 0, %s42
      %s46 = sphi 0, %s45
      %s62 = sphi 0, %s46
      %s68 = sphi 0, %s70
      %s71 = sphi 0, %s68
      %s72 = sphi 0, %s71
      %s88 = sphi 0, %s72
      %s94 = sphi 0, %s96
      %s97 = sphi 0, %s94
      %s98 = sphi 0, %s97
      %s114 = sphi 0, %s98
      %s120 = sphi 0, %s122
      %s123 = sphi 0, %s120
      %s124 = sphi 0, %s123
      %s140 = sphi 0, %s124
      %s144 = sphi 0, %s144
      %s146 = sphi 0, %s144
      %s147 = sphi 0, %s146
      %s161 = sphi 0, %s147
      %s167 = sphi 0, %s169
      %s170 = sphi 0, %s167
      %s171 = sphi 0, %s170
      %s187 = sphi 0, %s171
      %s195 = sphi 0, %s197
      %s198 = sphi 0, %s195
      %s199 = sphi 0, %s198
      %s215 = sphi 0, %s199
    $region4: #{tpu_custom_call.1} parent=1 // loop_header_branch
      %23 = sbr.rel (%p21) target = $region8
    $region5: #{tpu_custom_call.1} parent=1 // loop_body
      %s25 = ssub.s32 %s20, 1
      %s26 = ssub.s32 %s20, 2
      %s33 = sadd.s32 1, %s28
      %p34 = scmp.ge.s32.totalorder %s33, 2
      %s35 = scalar_select %p34, 0, %s33
      %s36 = sadd.s32 1, %s27
      %s37 = scalar_select %p34, %s36, %s27
      %p38 = scmp.ge.s32.totalorder %s37, 2
      %s39 = scalar_select %p38, 0, %s37
      %s40 = ssub.s32 %s27, %s39
      %p41 = scmp.eq.s32.totalorder %s40, 0
      %s43 = sadd.s32 %s42, 1
      %s44 = scalar_select %p41, %s42, %s43
      %p47 = pneg %p41
      %p48 = scmp.eq.s32.totalorder %s20, 3
      %p49 = por %p47, %p48
      %p50 = scmp.ne.s32.totalorder %s42, %s45
      %p51 = scmp.eq.s32.totalorder %s20, 0
      %p52 = por %p50, %p51
      %p53 = scmp.ne.s32.totalorder %s42, %s45
      %p54 = scmp.eq.s32.totalorder %s25, 3
      %p55 = por %p53, %p54
      %p56 = scmp.ne.s32.totalorder %s45, %s46
      %p57 = scmp.eq.s32.totalorder %s25, 0
      %p58 = por %p56, %p57
      %p59 = scmp.ne.s32.totalorder %s45, %s46
      %p60 = scmp.eq.s32.totalorder %s26, 3
      %p61 = por %p59, %p60
      %p63 = scmp.ne.s32.totalorder %s46, %s62
      %p64 = scmp.eq.s32.totalorder %s26, 0
      %p65 = por %p63, %p64
      %s66 = ssub.s32 %s28, %s35
      %p67 = scmp.eq.s32.totalorder %s66, 0
      %s69 = sadd.s32 %s68, 1
      %s70 = scalar_select %p67, %s68, %s69
      %p73 = pneg %p67
      %p74 = scmp.eq.s32.totalorder %s20, 3
      %p75 = por %p73, %p74
      %p76 = scmp.ne.s32.totalorder %s68, %s71
      %p77 = scmp.eq.s32.totalorder %s20, 0
      %p78 = por %p76, %p77
      %p79 = scmp.ne.s32.totalorder %s68, %s71
      %p80 = scmp.eq.s32.totalorder %s25, 3
      %p81 = por %p79, %p80
      %p82 = scmp.ne.s32.totalorder %s71, %s72
      %p83 = scmp.eq.s32.totalorder %s25, 0
      %p84 = por %p82, %p83
      %p85 = scmp.ne.s32.totalorder %s71, %s72
      %p86 = scmp.eq.s32.totalorder %s26, 3
      %p87 = por %p85, %p86
      %p89 = scmp.ne.s32.totalorder %s72, %s88
      %p90 = scmp.eq.s32.totalorder %s26, 0
      %p91 = por %p89, %p90
      %s92 = ssub.s32 %s28, %s35
      %p93 = scmp.eq.s32.totalorder %s92, 0
      %s95 = sadd.s32 %s94, 1
      %s96 = scalar_select %p93, %s94, %s95
      %p99 = pneg %p93
      %p100 = scmp.eq.s32.totalorder %s20, 3
      %p101 = por %p99, %p100
      %p102 = scmp.ne.s32.totalorder %s94, %s97
      %p103 = scmp.eq.s32.totalorder %s20, 0
      %p104 = por %p102, %p103
      %p105 = scmp.ne.s32.totalorder %s94, %s97
      %p106 = scmp.eq.s32.totalorder %s25, 3
      %p107 = por %p105, %p106
      %p108 = scmp.ne.s32.totalorder %s97, %s98
      %p109 = scmp.eq.s32.totalorder %s25, 0
      %p110 = por %p108, %p109
      %p111 = scmp.ne.s32.totalorder %s97, %s98
      %p112 = scmp.eq.s32.totalorder %s26, 3
      %p113 = por %p111, %p112
      %p115 = scmp.ne.s32.totalorder %s98, %s114
      %p116 = scmp.eq.s32.totalorder %s26, 0
      %p117 = por %p115, %p116
      %s118 = ssub.s32 %s27, %s39
      %p119 = scmp.eq.s32.totalorder %s118, 0
      %s121 = sadd.s32 %s120, 1
      %s122 = scalar_select %p119, %s120, %s121
      %p125 = pneg %p119
      %p126 = scmp.eq.s32.totalorder %s20, 3
      %p127 = por %p125, %p126
      %p128 = scmp.ne.s32.totalorder %s120, %s123
      %p129 = scmp.eq.s32.totalorder %s20, 0
      %p130 = por %p128, %p129
      %p131 = scmp.ne.s32.totalorder %s120, %s123
      %p132 = scmp.eq.s32.totalorder %s25, 3
      %p133 = por %p131, %p132
      %p134 = scmp.ne.s32.totalorder %s123, %s124
      %p135 = scmp.eq.s32.totalorder %s25, 0
      %p136 = por %p134, %p135
      %p137 = scmp.ne.s32.totalorder %s123, %s124
      %p138 = scmp.eq.s32.totalorder %s26, 3
      %p139 = por %p137, %p138
      %p141 = scmp.ne.s32.totalorder %s124, %s140
      %p142 = scmp.eq.s32.totalorder %s26, 0
      %p143 = por %p141, %p142
      %s145 = sadd.s32 %s144, 1
      %p148 = scmp.eq.s32.totalorder %s20, 3
      %p149 = scmp.ne.s32.totalorder %s144, %s146
      %p150 = scmp.eq.s32.totalorder %s20, 0
      %p151 = por %p149, %p150
      %p152 = scmp.ne.s32.totalorder %s144, %s146
      %p153 = scmp.eq.s32.totalorder %s25, 3
      %p154 = por %p152, %p153
      %p155 = scmp.ne.s32.totalorder %s146, %s147
      %p156 = scmp.eq.s32.totalorder %s25, 0
      %p157 = por %p155, %p156
      %p158 = scmp.ne.s32.totalorder %s146, %s147
      %p159 = scmp.eq.s32.totalorder %s26, 3
      %p160 = por %p158, %p159
      %p162 = scmp.ne.s32.totalorder %s147, %s161
      %p163 = scmp.eq.s32.totalorder %s26, 0
      %p164 = por %p162, %p163
      %s165 = ssub.s32 %s27, %s39
      %p166 = scmp.eq.s32.totalorder %s165, 0
      %s168 = sadd.s32 %s167, 1
      %s169 = scalar_select %p166, %s167, %s168
      %p172 = pneg %p166
      %p173 = scmp.eq.s32.totalorder %s20, 3
      %p174 = por %p172, %p173
      %p175 = scmp.ne.s32.totalorder %s167, %s170
      %p176 = scmp.eq.s32.totalorder %s20, 0
      %p177 = por %p175, %p176
      %p178 = scmp.ne.s32.totalorder %s167, %s170
      %p179 = scmp.eq.s32.totalorder %s25, 3
      %p180 = por %p178, %p179
      %p181 = scmp.ne.s32.totalorder %s170, %s171
      %p182 = scmp.eq.s32.totalorder %s25, 0
      %p183 = por %p181, %p182
      %p184 = scmp.ne.s32.totalorder %s170, %s171
      %p185 = scmp.eq.s32.totalorder %s26, 3
      %p186 = por %p184, %p185
      %p188 = scmp.ne.s32.totalorder %s171, %s187
      %p189 = scmp.eq.s32.totalorder %s26, 0
      %p190 = por %p188, %p189
      %s191 = ssub.s32 %s27, %s39
      %s192 = ssub.s32 %s28, %s35
      %s193 = sor.u32 %s191, %s192
      %p194 = scmp.eq.s32.totalorder %s193, 0
      %s196 = sadd.s32 %s195, 1
      %s197 = scalar_select %p194, %s195, %s196
      %p200 = pneg %p194
      %p201 = scmp.eq.s32.totalorder %s20, 3
      %p202 = por %p200, %p201
      %p203 = scmp.ne.s32.totalorder %s195, %s198
      %p204 = scmp.eq.s32.totalorder %s20, 0
      %p205 = por %p203, %p204
      %p206 = scmp.ne.s32.totalorder %s195, %s198
      %p207 = scmp.eq.s32.totalorder %s25, 3
      %p208 = por %p206, %p207
      %p209 = scmp.ne.s32.totalorder %s198, %s199
      %p210 = scmp.eq.s32.totalorder %s25, 0
      %p211 = por %p209, %p210
      %p212 = scmp.ne.s32.totalorder %s198, %s199
      %p213 = scmp.eq.s32.totalorder %s26, 3
      %p214 = por %p212, %p213
      %p216 = scmp.ne.s32.totalorder %s199, %s215
      %p217 = scmp.eq.s32.totalorder %s26, 0
      %p218 = por %p216, %p217
      %p219 = scmp.le.s32.totalorder 1, %s20
      %p220 = scmp.lt.s32.totalorder %s20, 5
      %p221 = pnand %p219, %p220
      %p222 = pneg %p221
      // Predicated region
      $region9: #{tpu_custom_call.1} parent=5 // pred_check
        _
      $region10: #{tpu_custom_call.1} parent=5 // pred_check_branch
        %224 = sbr.rel (%p221) target = $region12
      $region11: #{tpu_custom_call.1} parent=5 // pred_region
        %s225 = ssub.s32 %s20, 1
        // Predicated region
        $region13: #{tpu_custom_call.1} parent=11 // pred_check
          %p226 = pneg %p157
        $region14: #{tpu_custom_call.1} parent=11 // pred_check_branch
          %228 = sbr.rel (%p226) target = $region16
        $region15: #{tpu_custom_call.1} parent=11 // pred_region
          _
        $region16: #{tpu_custom_call.1} parent=11 // pred_fallthru
          _
      $region12: #{tpu_custom_call.1} parent=5 // pred_fallthru
        _
      %p229 = scmp.lt.s32.totalorder %s20, 4
      // Predicated region
      $region17: #{tpu_custom_call.1} parent=5 // pred_check
        %p230 = pneg %p229
      $region18: #{tpu_custom_call.1} parent=5 // pred_check_branch
        %232 = sbr.rel (%p230) target = $region20
      $region19: #{tpu_custom_call.1} parent=5 // pred_region
        // Predicated region
        $region21: #{tpu_custom_call.1} parent=19 // pred_check
          %p233 = pneg %p52
        $region22: #{tpu_custom_call.1} parent=19 // pred_check_branch
          %235 = sbr.rel (%p233) target = $region24
        $region23: #{tpu_custom_call.1} parent=19 // pred_region
          %s236 = sand.u32 %s42, 1
          %s237 = sand.u32 %s42, 1
          %s238 = smul.addr %s237, 128
          %s239 = scalar_lea.vmem [#allocation4], %s238
          %s240 = smul.u32 16, %s27
          %s241 = smul.addr %s240, 4
          %s242 = scalar_lea.vmem %s0, %s241
          // Predicated region
          $region25: #{tpu_custom_call.1} parent=23 // pred_check
            _
          $region26: #{tpu_custom_call.1} parent=23 // pred_check_branch
            %244 = sbr.rel (0) target = $region28
          $region27: #{tpu_custom_call.1} parent=23 // pred_region
            // Predicated region
            $region29: #{tpu_custom_call.1} parent=27 // pred_check
              _
            $region30: #{tpu_custom_call.1} parent=27 // pred_check_branch
              %246 = sbr.rel target = $region32
            $region31: #{tpu_custom_call.1} parent=27 // pred_region
              // Predicated region
              $region44: #{tpu_custom_call.1} parent=31 // pred_check
                _
              $region45: #{tpu_custom_call.1} parent=31 // pred_check_branch
                %324 = sbr.rel (0) target = $region47
              $region46: #{tpu_custom_call.1} parent=31 // pred_region
                loop: start=0, step=1, limit=1
                $region48: #{tpu_custom_call.1} parent=46 // loop_pre_header
                  _
                $region49: #{tpu_custom_call.1} parent=46 // loop_header
                  %s326 = sphi 0, %s330
                  %p327 = scmp.ge.s32.totalorder %s326, 1
                  %s331 = sphi %s242, %s242
                  %s332 = sphi %s239, %s239
                $region50: #{tpu_custom_call.1} parent=46 // loop_header_branch
                  %329 = sbr.rel (%p327) target = $region54
                $region51: #{tpu_custom_call.1} parent=46 // loop_body
                  _
                $region52: #{tpu_custom_call.1} parent=46 // loop_footer
                  %s330 = sadd.s32 1, %s326
                $region53: #{tpu_custom_call.1} parent=46 // loop_footer_branch
                  %325 = sbr.rel target = $region49
                $region54: #{tpu_custom_call.1} parent=46 // loop_exit
                  _
                %s334 = ssub.s32 16, 1
                loop: start=0, step=1, limit=1
                $region55: #{tpu_custom_call.1} parent=46 // loop_pre_header
                  _
                $region56: #{tpu_custom_call.1} parent=46 // loop_header
                  %s336 = sphi 0, %s340
                  %p337 = scmp.ge.s32.totalorder %s336, 1
                  %s341 = sphi %s242, %s242
                  %s342 = sphi %s239, %s239
                $region57: #{tpu_custom_call.1} parent=46 // loop_header_branch
                  %339 = sbr.rel (%p337) target = $region61
                $region58: #{tpu_custom_call.1} parent=46 // loop_body
                  %v343 = vld [vmem:[%s341] sm:%s334]
                  %344 = vst [vmem:[%s342] sm:%s334] %v343
                  %v345 = vld [vmem:[%s341 + $0x4] sm:%s334]
                  %346 = vst [vmem:[%s342 + $0x4] sm:%s334] %v345
                  %v347 = vld [vmem:[%s341 + $0x8] sm:%s334]
                  %348 = vst [vmem:[%s342 + $0x8] sm:%s334] %v347
                  %v349 = vld [vmem:[%s341 + $0xc] sm:%s334]
                  %350 = vst [vmem:[%s342 + $0xc] sm:%s334] %v349
                  %v351 = vld [vmem:[%s341 + $0x10] sm:%s334]
                  %352 = vst [vmem:[%s342 + $0x10] sm:%s334] %v351
                  %v353 = vld [vmem:[%s341 + $0x14] sm:%s334]
                  %354 = vst [vmem:[%s342 + $0x14] sm:%s334] %v353
                  %v355 = vld [vmem:[%s341 + $0x18] sm:%s334]
                  %356 = vst [vmem:[%s342 + $0x18] sm:%s334] %v355
                  %v357 = vld [vmem:[%s341 + $0x1c] sm:%s334]
                  %358 = vst [vmem:[%s342 + $0x1c] sm:%s334] %v357
                  %v359 = vld [vmem:[%s341 + $0x20] sm:%s334]
                  %360 = vst [vmem:[%s342 + $0x20] sm:%s334] %v359
                  %v361 = vld [vmem:[%s341 + $0x24] sm:%s334]
                  %362 = vst [vmem:[%s342 + $0x24] sm:%s334] %v361
                  %v363 = vld [vmem:[%s341 + $0x28] sm:%s334]
                  %364 = vst [vmem:[%s342 + $0x28] sm:%s334] %v363
                  %v365 = vld [vmem:[%s341 + $0x2c] sm:%s334]
                  %366 = vst [vmem:[%s342 + $0x2c] sm:%s334] %v365
                  %v367 = vld [vmem:[%s341 + $0x30] sm:%s334]
                  %368 = vst [vmem:[%s342 + $0x30] sm:%s334] %v367
                  %v369 = vld [vmem:[%s341 + $0x34] sm:%s334]
                  %370 = vst [vmem:[%s342 + $0x34] sm:%s334] %v369
                  %v371 = vld [vmem:[%s341 + $0x38] sm:%s334]
                  %372 = vst [vmem:[%s342 + $0x38] sm:%s334] %v371
                  %v373 = vld [vmem:[%s341 + $0x3c] sm:%s334]
                  %374 = vst [vmem:[%s342 + $0x3c] sm:%s334] %v373
                  %v375 = vld [vmem:[%s341 + $0x80] sm:%s334]
                  %376 = vst [vmem:[%s342 + $0x40] sm:%s334] %v375
                  %v377 = vld [vmem:[%s341 + $0x84] sm:%s334]
                  %378 = vst [vmem:[%s342 + $0x44] sm:%s334] %v377
                  %v379 = vld [vmem:[%s341 + $0x88] sm:%s334]
                  %380 = vst [vmem:[%s342 + $0x48] sm:%s334] %v379
                  %v381 = vld [vmem:[%s341 + $0x8c] sm:%s334]
                  %382 = vst [vmem:[%s342 + $0x4c] sm:%s334] %v381
                  %v383 = vld [vmem:[%s341 + $0x90] sm:%s334]
                  %384 = vst [vmem:[%s342 + $0x50] sm:%s334] %v383
                  %v385 = vld [vmem:[%s341 + $0x94] sm:%s334]
                  %386 = vst [vmem:[%s342 + $0x54] sm:%s334] %v385
                  %v387 = vld [vmem:[%s341 + $0x98] sm:%s334]
                  %388 = vst [vmem:[%s342 + $0x58] sm:%s334] %v387
                  %v389 = vld [vmem:[%s341 + $0x9c] sm:%s334]
                  %390 = vst [vmem:[%s342 + $0x5c] sm:%s334] %v389
                  %v391 = vld [vmem:[%s341 + $0xa0] sm:%s334]
                  %392 = vst [vmem:[%s342 + $0x60] sm:%s334] %v391
                  %v393 = vld [vmem:[%s341 + $0xa4] sm:%s334]
                  %394 = vst [vmem:[%s342 + $0x64] sm:%s334] %v393
                  %v395 = vld [vmem:[%s341 + $0xa8] sm:%s334]
                  %396 = vst [vmem:[%s342 + $0x68] sm:%s334] %v395
                  %v397 = vld [vmem:[%s341 + $0xac] sm:%s334]
                  %398 = vst [vmem:[%s342 + $0x6c] sm:%s334] %v397
                  %v399 = vld [vmem:[%s341 + $0xb0] sm:%s334]
                  %400 = vst [vmem:[%s342 + $0x70] sm:%s334] %v399
                  %v401 = vld [vmem:[%s341 + $0xb4] sm:%s334]
                  %402 = vst [vmem:[%s342 + $0x74] sm:%s334] %v401
                  %v403 = vld [vmem:[%s341 + $0xb8] sm:%s334]
                  %404 = vst [vmem:[%s342 + $0x78] sm:%s334] %v403
                  %v405 = vld [vmem:[%s341 + $0xbc] sm:%s334]
                  %406 = vst [vmem:[%s342 + $0x7c] sm:%s334] %v405
                $region59: #{tpu_custom_call.1} parent=46 // loop_footer
                  %s340 = sadd.s32 1, %s336
                $region60: #{tpu_custom_call.1} parent=46 // loop_footer_branch
                  %335 = sbr.rel target = $region56
                $region61: #{tpu_custom_call.1} parent=46 // loop_exit
                  _
              $region47: #{tpu_custom_call.1} parent=31 // pred_fallthru
                _
            $region32: #{tpu_custom_call.1} parent=27 // pred_fallthru
              _
            // Predicated region
            $region33: #{tpu_custom_call.1} parent=27 // pred_check
              _
            $region34: #{tpu_custom_call.1} parent=27 // pred_check_branch
              %248 = sbr.rel (0) target = $region36
            $region35: #{tpu_custom_call.1} parent=27 // pred_region
              %s250 = ssub.s32 16, 1
              loop: start=0, step=1, limit=1
              $region37: #{tpu_custom_call.1} parent=35 // loop_pre_header
                _
              $region38: #{tpu_custom_call.1} parent=35 // loop_header
                %s252 = sphi 0, %s256
                %p253 = scmp.ge.s32.totalorder %s252, 1
                %s257 = sphi %s242, %s242
                %s258 = sphi %s239, %s239
              $region39: #{tpu_custom_call.1} parent=35 // loop_header_branch
                %255 = sbr.rel (%p253) target = $region43
              $region40: #{tpu_custom_call.1} parent=35 // loop_body
                %v259 = vld [vmem:[%s257] sm:%s250]
                %260 = vst [vmem:[%s258] sm:%s250] %v259
                %v261 = vld [vmem:[%s257 + $0x4] sm:%s250]
                %262 = vst [vmem:[%s258 + $0x4] sm:%s250] %v261
                %v263 = vld [vmem:[%s257 + $0x8] sm:%s250]
                %264 = vst [vmem:[%s258 + $0x8] sm:%s250] %v263
                %v265 = vld [vmem:[%s257 + $0xc] sm:%s250]
                %266 = vst [vmem:[%s258 + $0xc] sm:%s250] %v265
                %v267 = vld [vmem:[%s257 + $0x10] sm:%s250]
                %268 = vst [vmem:[%s258 + $0x10] sm:%s250] %v267
                %v269 = vld [vmem:[%s257 + $0x14] sm:%s250]
                %270 = vst [vmem:[%s258 + $0x14] sm:%s250] %v269
                %v271 = vld [vmem:[%s257 + $0x18] sm:%s250]
                %272 = vst [vmem:[%s258 + $0x18] sm:%s250] %v271
                %v273 = vld [vmem:[%s257 + $0x1c] sm:%s250]
                %274 = vst [vmem:[%s258 + $0x1c] sm:%s250] %v273
                %v275 = vld [vmem:[%s257 + $0x20] sm:%s250]
                %276 = vst [vmem:[%s258 + $0x20] sm:%s250] %v275
                %v277 = vld [vmem:[%s257 + $0x24] sm:%s250]
                %278 = vst [vmem:[%s258 + $0x24] sm:%s250] %v277
                %v279 = vld [vmem:[%s257 + $0x28] sm:%s250]
                %280 = vst [vmem:[%s258 + $0x28] sm:%s250] %v279
                %v281 = vld [vmem:[%s257 + $0x2c] sm:%s250]
                %282 = vst [vmem:[%s258 + $0x2c] sm:%s250] %v281
                %v283 = vld [vmem:[%s257 + $0x30] sm:%s250]
                %284 = vst [vmem:[%s258 + $0x30] sm:%s250] %v283
                %v285 = vld [vmem:[%s257 + $0x34] sm:%s250]
                %286 = vst [vmem:[%s258 + $0x34] sm:%s250] %v285
                %v287 = vld [vmem:[%s257 + $0x38] sm:%s250]
                %288 = vst [vmem:[%s258 + $0x38] sm:%s250] %v287
                %v289 = vld [vmem:[%s257 + $0x3c] sm:%s250]
                %290 = vst [vmem:[%s258 + $0x3c] sm:%s250] %v289
                %v291 = vld [vmem:[%s257 + $0x80] sm:%s250]
                %292 = vst [vmem:[%s258 + $0x40] sm:%s250] %v291
                %v293 = vld [vmem:[%s257 + $0x84] sm:%s250]
                %294 = vst [vmem:[%s258 + $0x44] sm:%s250] %v293
                %v295 = vld [vmem:[%s257 + $0x88] sm:%s250]
                %296 = vst [vmem:[%s258 + $0x48] sm:%s250] %v295
                %v297 = vld [vmem:[%s257 + $0x8c] sm:%s250]
                %298 = vst [vmem:[%s258 + $0x4c] sm:%s250] %v297
                %v299 = vld [vmem:[%s257 + $0x90] sm:%s250]
                %300 = vst [vmem:[%s258 + $0x50] sm:%s250] %v299
                %v301 = vld [vmem:[%s257 + $0x94] sm:%s250]
                %302 = vst [vmem:[%s258 + $0x54] sm:%s250] %v301
                %v303 = vld [vmem:[%s257 + $0x98] sm:%s250]
                %304 = vst [vmem:[%s258 + $0x58] sm:%s250] %v303
                %v305 = vld [vmem:[%s257 + $0x9c] sm:%s250]
                %306 = vst [vmem:[%s258 + $0x5c] sm:%s250] %v305
                %v307 = vld [vmem:[%s257 + $0xa0] sm:%s250]
                %308 = vst [vmem:[%s258 + $0x60] sm:%s250] %v307
                %v309 = vld [vmem:[%s257 + $0xa4] sm:%s250]
                %310 = vst [vmem:[%s258 + $0x64] sm:%s250] %v309
                %v311 = vld [vmem:[%s257 + $0xa8] sm:%s250]
                %312 = vst [vmem:[%s258 + $0x68] sm:%s250] %v311
                %v313 = vld [vmem:[%s257 + $0xac] sm:%s250]
                %314 = vst [vmem:[%s258 + $0x6c] sm:%s250] %v313
                %v315 = vld [vmem:[%s257 + $0xb0] sm:%s250]
                %316 = vst [vmem:[%s258 + $0x70] sm:%s250] %v315
                %v317 = vld [vmem:[%s257 + $0xb4] sm:%s250]
                %318 = vst [vmem:[%s258 + $0x74] sm:%s250] %v317
                %v319 = vld [vmem:[%s257 + $0xb8] sm:%s250]
                %320 = vst [vmem:[%s258 + $0x78] sm:%s250] %v319
                %v321 = vld [vmem:[%s257 + $0xbc] sm:%s250]
                %322 = vst [vmem:[%s258 + $0x7c] sm:%s250] %v321
              $region41: #{tpu_custom_call.1} parent=35 // loop_footer
                %s256 = sadd.s32 1, %s252
              $region42: #{tpu_custom_call.1} parent=35 // loop_footer_branch
                %251 = sbr.rel target = $region38
              $region43: #{tpu_custom_call.1} parent=35 // loop_exit
                _
            $region36: #{tpu_custom_call.1} parent=27 // pred_fallthru
              _
          $region28: #{tpu_custom_call.1} parent=23 // pred_fallthru
            _
          %407 = vnop
        $region24: #{tpu_custom_call.1} parent=19 // pred_fallthru
          _
        // Predicated region
        $region62: #{tpu_custom_call.1} parent=19 // pred_check
          %p408 = pneg %p78
        $region63: #{tpu_custom_call.1} parent=19 // pred_check_branch
          %410 = sbr.rel (%p408) target = $region65
        $region64: #{tpu_custom_call.1} parent=19 // pred_region
          %s411 = sand.u32 %s68, 1
          %s412 = sand.u32 %s68, 1
          %s413 = smul.addr %s412, 8
          %s414 = scalar_lea.vmem [#allocation5], %s413
          %s415 = smul.addr %s28, 4
          %s416 = scalar_lea.vmem %s1, %s415
          // Predicated region
          $region66: #{tpu_custom_call.1} parent=64 // pred_check
            _
          $region67: #{tpu_custom_call.1} parent=64 // pred_check_branch
            %418 = sbr.rel (0) target = $region69
          $region68: #{tpu_custom_call.1} parent=64 // pred_region
            // Predicated region
            $region70: #{tpu_custom_call.1} parent=68 // pred_check
              _
            $region71: #{tpu_custom_call.1} parent=68 // pred_check_branch
              %420 = sbr.rel target = $region73
            $region72: #{tpu_custom_call.1} parent=68 // pred_region
              // Predicated region
              $region85: #{tpu_custom_call.1} parent=72 // pred_check
                _
              $region86: #{tpu_custom_call.1} parent=72 // pred_check_branch
                %438 = sbr.rel (0) target = $region88
              $region87: #{tpu_custom_call.1} parent=72 // pred_region
                loop: start=0, step=1, limit=1
                $region89: #{tpu_custom_call.1} parent=87 // loop_pre_header
                  _
                $region90: #{tpu_custom_call.1} parent=87 // loop_header
                  %s440 = sphi 0, %s444
                  %p441 = scmp.ge.s32.totalorder %s440, 1
                  %s445 = sphi %s416, %s416
                  %s446 = sphi %s414, %s414
                $region91: #{tpu_custom_call.1} parent=87 // loop_header_branch
                  %443 = sbr.rel (%p441) target = $region95
                $region92: #{tpu_custom_call.1} parent=87 // loop_body
                  _
                $region93: #{tpu_custom_call.1} parent=87 // loop_footer
                  %s444 = sadd.s32 1, %s440
                $region94: #{tpu_custom_call.1} parent=87 // loop_footer_branch
                  %439 = sbr.rel target = $region90
                $region95: #{tpu_custom_call.1} parent=87 // loop_exit
                  _
                %s448 = ssub.s32 16, 1
                loop: start=0, step=1, limit=1
                $region96: #{tpu_custom_call.1} parent=87 // loop_pre_header
                  _
                $region97: #{tpu_custom_call.1} parent=87 // loop_header
                  %s450 = sphi 0, %s454
                  %p451 = scmp.ge.s32.totalorder %s450, 1
                  %s455 = sphi %s416, %s416
                  %s456 = sphi %s414, %s414
                $region98: #{tpu_custom_call.1} parent=87 // loop_header_branch
                  %453 = sbr.rel (%p451) target = $region102
                $region99: #{tpu_custom_call.1} parent=87 // loop_body
                  %v457 = vld [vmem:[%s455] sm:%s448]
                  %458 = vst [vmem:[%s456] sm:%s448] %v457
                  %v459 = vld [vmem:[%s455 + $0x8] sm:%s448]
                  %460 = vst [vmem:[%s456 + $0x4] sm:%s448] %v459
                $region100: #{tpu_custom_call.1} parent=87 // loop_footer
                  %s454 = sadd.s32 1, %s450
                $region101: #{tpu_custom_call.1} parent=87 // loop_footer_branch
                  %449 = sbr.rel target = $region97
                $region102: #{tpu_custom_call.1} parent=87 // loop_exit
                  _
              $region88: #{tpu_custom_call.1} parent=72 // pred_fallthru
                _
            $region73: #{tpu_custom_call.1} parent=68 // pred_fallthru
              _
            // Predicated region
            $region74: #{tpu_custom_call.1} parent=68 // pred_check
              _
            $region75: #{tpu_custom_call.1} parent=68 // pred_check_branch
              %422 = sbr.rel (0) target = $region77
            $region76: #{tpu_custom_call.1} parent=68 // pred_region
              %s424 = ssub.s32 16, 1
              loop: start=0, step=1, limit=1
              $region78: #{tpu_custom_call.1} parent=76 // loop_pre_header
                _
              $region79: #{tpu_custom_call.1} parent=76 // loop_header
                %s426 = sphi 0, %s430
                %p427 = scmp.ge.s32.totalorder %s426, 1
                %s431 = sphi %s416, %s416
                %s432 = sphi %s414, %s414
              $region80: #{tpu_custom_call.1} parent=76 // loop_header_branch
                %429 = sbr.rel (%p427) target = $region84
              $region81: #{tpu_custom_call.1} parent=76 // loop_body
                %v433 = vld [vmem:[%s431] sm:%s424]
                %434 = vst [vmem:[%s432] sm:%s424] %v433
                %v435 = vld [vmem:[%s431 + $0x8] sm:%s424]
                %436 = vst [vmem:[%s432 + $0x4] sm:%s424] %v435
              $region82: #{tpu_custom_call.1} parent=76 // loop_footer
                %s430 = sadd.s32 1, %s426
              $region83: #{tpu_custom_call.1} parent=76 // loop_footer_branch
                %425 = sbr.rel target = $region79
              $region84: #{tpu_custom_call.1} parent=76 // loop_exit
                _
            $region77: #{tpu_custom_call.1} parent=68 // pred_fallthru
              _
          $region69: #{tpu_custom_call.1} parent=64 // pred_fallthru
            _
          %461 = vnop
        $region65: #{tpu_custom_call.1} parent=19 // pred_fallthru
          _
        // Predicated region
        $region103: #{tpu_custom_call.1} parent=19 // pred_check
          %p462 = pneg %p104
        $region104: #{tpu_custom_call.1} parent=19 // pred_check_branch
          %464 = sbr.rel (%p462) target = $region106
        $region105: #{tpu_custom_call.1} parent=19 // pred_region
          %s465 = sand.u32 %s94, 1
          %s466 = sand.u32 %s94, 1
          %s467 = smul.addr %s466, 128
          %s468 = scalar_lea.vmem [#allocation6], %s467
          %s469 = smul.u32 16, %s28
          %s470 = smul.addr %s469, 4
          %s471 = scalar_lea.vmem %s2, %s470
          // Predicated region
          $region107: #{tpu_custom_call.1} parent=105 // pred_check
            _
          $region108: #{tpu_custom_call.1} parent=105 // pred_check_branch
            %473 = sbr.rel (0) target = $region110
          $region109: #{tpu_custom_call.1} parent=105 // pred_region
            // Predicated region
            $region111: #{tpu_custom_call.1} parent=109 // pred_check
              _
            $region112: #{tpu_custom_call.1} parent=109 // pred_check_branch
              %475 = sbr.rel target = $region114
            $region113: #{tpu_custom_call.1} parent=109 // pred_region
              // Predicated region
              $region126: #{tpu_custom_call.1} parent=113 // pred_check
                _
              $region127: #{tpu_custom_call.1} parent=113 // pred_check_branch
                %553 = sbr.rel (0) target = $region129
              $region128: #{tpu_custom_call.1} parent=113 // pred_region
                loop: start=0, step=1, limit=1
                $region130: #{tpu_custom_call.1} parent=128 // loop_pre_header
                  _
                $region131: #{tpu_custom_call.1} parent=128 // loop_header
                  %s555 = sphi 0, %s559
                  %p556 = scmp.ge.s32.totalorder %s555, 1
                  %s560 = sphi %s471, %s471
                  %s561 = sphi %s468, %s468
                $region132: #{tpu_custom_call.1} parent=128 // loop_header_branch
                  %558 = sbr.rel (%p556) target = $region136
                $region133: #{tpu_custom_call.1} parent=128 // loop_body
                  _
                $region134: #{tpu_custom_call.1} parent=128 // loop_footer
                  %s559 = sadd.s32 1, %s555
                $region135: #{tpu_custom_call.1} parent=128 // loop_footer_branch
                  %554 = sbr.rel target = $region131
                $region136: #{tpu_custom_call.1} parent=128 // loop_exit
                  _
                %s563 = ssub.s32 16, 1
                loop: start=0, step=1, limit=1
                $region137: #{tpu_custom_call.1} parent=128 // loop_pre_header
                  _
                $region138: #{tpu_custom_call.1} parent=128 // loop_header
                  %s565 = sphi 0, %s569
                  %p566 = scmp.ge.s32.totalorder %s565, 1
                  %s570 = sphi %s471, %s471
                  %s571 = sphi %s468, %s468
                $region139: #{tpu_custom_call.1} parent=128 // loop_header_branch
                  %568 = sbr.rel (%p566) target = $region143
                $region140: #{tpu_custom_call.1} parent=128 // loop_body
                  %v572 = vld [vmem:[%s570] sm:%s563]
                  %573 = vst [vmem:[%s571] sm:%s563] %v572
                  %v574 = vld [vmem:[%s570 + $0x4] sm:%s563]
                  %575 = vst [vmem:[%s571 + $0x4] sm:%s563] %v574
                  %v576 = vld [vmem:[%s570 + $0x8] sm:%s563]
                  %577 = vst [vmem:[%s571 + $0x8] sm:%s563] %v576
                  %v578 = vld [vmem:[%s570 + $0xc] sm:%s563]
                  %579 = vst [vmem:[%s571 + $0xc] sm:%s563] %v578
                  %v580 = vld [vmem:[%s570 + $0x10] sm:%s563]
                  %581 = vst [vmem:[%s571 + $0x10] sm:%s563] %v580
                  %v582 = vld [vmem:[%s570 + $0x14] sm:%s563]
                  %583 = vst [vmem:[%s571 + $0x14] sm:%s563] %v582
                  %v584 = vld [vmem:[%s570 + $0x18] sm:%s563]
                  %585 = vst [vmem:[%s571 + $0x18] sm:%s563] %v584
                  %v586 = vld [vmem:[%s570 + $0x1c] sm:%s563]
                  %587 = vst [vmem:[%s571 + $0x1c] sm:%s563] %v586
                  %v588 = vld [vmem:[%s570 + $0x20] sm:%s563]
                  %589 = vst [vmem:[%s571 + $0x20] sm:%s563] %v588
                  %v590 = vld [vmem:[%s570 + $0x24] sm:%s563]
                  %591 = vst [vmem:[%s571 + $0x24] sm:%s563] %v590
                  %v592 = vld [vmem:[%s570 + $0x28] sm:%s563]
                  %593 = vst [vmem:[%s571 + $0x28] sm:%s563] %v592
                  %v594 = vld [vmem:[%s570 + $0x2c] sm:%s563]
                  %595 = vst [vmem:[%s571 + $0x2c] sm:%s563] %v594
                  %v596 = vld [vmem:[%s570 + $0x30] sm:%s563]
                  %597 = vst [vmem:[%s571 + $0x30] sm:%s563] %v596
                  %v598 = vld [vmem:[%s570 + $0x34] sm:%s563]
                  %599 = vst [vmem:[%s571 + $0x34] sm:%s563] %v598
                  %v600 = vld [vmem:[%s570 + $0x38] sm:%s563]
                  %601 = vst [vmem:[%s571 + $0x38] sm:%s563] %v600
                  %v602 = vld [vmem:[%s570 + $0x3c] sm:%s563]
                  %603 = vst [vmem:[%s571 + $0x3c] sm:%s563] %v602
                  %v604 = vld [vmem:[%s570 + $0x80] sm:%s563]
                  %605 = vst [vmem:[%s571 + $0x40] sm:%s563] %v604
                  %v606 = vld [vmem:[%s570 + $0x84] sm:%s563]
                  %607 = vst [vmem:[%s571 + $0x44] sm:%s563] %v606
                  %v608 = vld [vmem:[%s570 + $0x88] sm:%s563]
                  %609 = vst [vmem:[%s571 + $0x48] sm:%s563] %v608
                  %v610 = vld [vmem:[%s570 + $0x8c] sm:%s563]
                  %611 = vst [vmem:[%s571 + $0x4c] sm:%s563] %v610
                  %v612 = vld [vmem:[%s570 + $0x90] sm:%s563]
                  %613 = vst [vmem:[%s571 + $0x50] sm:%s563] %v612
                  %v614 = vld [vmem:[%s570 + $0x94] sm:%s563]
                  %615 = vst [vmem:[%s571 + $0x54] sm:%s563] %v614
                  %v616 = vld [vmem:[%s570 + $0x98] sm:%s563]
                  %617 = vst [vmem:[%s571 + $0x58] sm:%s563] %v616
                  %v618 = vld [vmem:[%s570 + $0x9c] sm:%s563]
                  %619 = vst [vmem:[%s571 + $0x5c] sm:%s563] %v618
                  %v620 = vld [vmem:[%s570 + $0xa0] sm:%s563]
                  %621 = vst [vmem:[%s571 + $0x60] sm:%s563] %v620
                  %v622 = vld [vmem:[%s570 + $0xa4] sm:%s563]
                  %623 = vst [vmem:[%s571 + $0x64] sm:%s563] %v622
                  %v624 = vld [vmem:[%s570 + $0xa8] sm:%s563]
                  %625 = vst [vmem:[%s571 + $0x68] sm:%s563] %v624
                  %v626 = vld [vmem:[%s570 + $0xac] sm:%s563]
                  %627 = vst [vmem:[%s571 + $0x6c] sm:%s563] %v626
                  %v628 = vld [vmem:[%s570 + $0xb0] sm:%s563]
                  %629 = vst [vmem:[%s571 + $0x70] sm:%s563] %v628
                  %v630 = vld [vmem:[%s570 + $0xb4] sm:%s563]
                  %631 = vst [vmem:[%s571 + $0x74] sm:%s563] %v630
                  %v632 = vld [vmem:[%s570 + $0xb8] sm:%s563]
                  %633 = vst [vmem:[%s571 + $0x78] sm:%s563] %v632
                  %v634 = vld [vmem:[%s570 + $0xbc] sm:%s563]
                  %635 = vst [vmem:[%s571 + $0x7c] sm:%s563] %v634
                $region141: #{tpu_custom_call.1} parent=128 // loop_footer
                  %s569 = sadd.s32 1, %s565
                $region142: #{tpu_custom_call.1} parent=128 // loop_footer_branch
                  %564 = sbr.rel target = $region138
                $region143: #{tpu_custom_call.1} parent=128 // loop_exit
                  _
              $region129: #{tpu_custom_call.1} parent=113 // pred_fallthru
                _
            $region114: #{tpu_custom_call.1} parent=109 // pred_fallthru
              _
            // Predicated region
            $region115: #{tpu_custom_call.1} parent=109 // pred_check
              _
            $region116: #{tpu_custom_call.1} parent=109 // pred_check_branch
              %477 = sbr.rel (0) target = $region118
            $region117: #{tpu_custom_call.1} parent=109 // pred_region
              %s479 = ssub.s32 16, 1
              loop: start=0, step=1, limit=1
              $region119: #{tpu_custom_call.1} parent=117 // loop_pre_header
                _
              $region120: #{tpu_custom_call.1} parent=117 // loop_header
                %s481 = sphi 0, %s485
                %p482 = scmp.ge.s32.totalorder %s481, 1
                %s486 = sphi %s471, %s471
                %s487 = sphi %s468, %s468
              $region121: #{tpu_custom_call.1} parent=117 // loop_header_branch
                %484 = sbr.rel (%p482) target = $region125
              $region122: #{tpu_custom_call.1} parent=117 // loop_body
                %v488 = vld [vmem:[%s486] sm:%s479]
                %489 = vst [vmem:[%s487] sm:%s479] %v488
                %v490 = vld [vmem:[%s486 + $0x4] sm:%s479]
                %491 = vst [vmem:[%s487 + $0x4] sm:%s479] %v490
                %v492 = vld [vmem:[%s486 + $0x8] sm:%s479]
                %493 = vst [vmem:[%s487 + $0x8] sm:%s479] %v492
                %v494 = vld [vmem:[%s486 + $0xc] sm:%s479]
                %495 = vst [vmem:[%s487 + $0xc] sm:%s479] %v494
                %v496 = vld [vmem:[%s486 + $0x10] sm:%s479]
                %497 = vst [vmem:[%s487 + $0x10] sm:%s479] %v496
                %v498 = vld [vmem:[%s486 + $0x14] sm:%s479]
                %499 = vst [vmem:[%s487 + $0x14] sm:%s479] %v498
                %v500 = vld [vmem:[%s486 + $0x18] sm:%s479]
                %501 = vst [vmem:[%s487 + $0x18] sm:%s479] %v500
                %v502 = vld [vmem:[%s486 + $0x1c] sm:%s479]
                %503 = vst [vmem:[%s487 + $0x1c] sm:%s479] %v502
                %v504 = vld [vmem:[%s486 + $0x20] sm:%s479]
                %505 = vst [vmem:[%s487 + $0x20] sm:%s479] %v504
                %v506 = vld [vmem:[%s486 + $0x24] sm:%s479]
                %507 = vst [vmem:[%s487 + $0x24] sm:%s479] %v506
                %v508 = vld [vmem:[%s486 + $0x28] sm:%s479]
                %509 = vst [vmem:[%s487 + $0x28] sm:%s479] %v508
                %v510 = vld [vmem:[%s486 + $0x2c] sm:%s479]
                %511 = vst [vmem:[%s487 + $0x2c] sm:%s479] %v510
                %v512 = vld [vmem:[%s486 + $0x30] sm:%s479]
                %513 = vst [vmem:[%s487 + $0x30] sm:%s479] %v512
                %v514 = vld [vmem:[%s486 + $0x34] sm:%s479]
                %515 = vst [vmem:[%s487 + $0x34] sm:%s479] %v514
                %v516 = vld [vmem:[%s486 + $0x38] sm:%s479]
                %517 = vst [vmem:[%s487 + $0x38] sm:%s479] %v516
                %v518 = vld [vmem:[%s486 + $0x3c] sm:%s479]
                %519 = vst [vmem:[%s487 + $0x3c] sm:%s479] %v518
                %v520 = vld [vmem:[%s486 + $0x80] sm:%s479]
                %521 = vst [vmem:[%s487 + $0x40] sm:%s479] %v520
                %v522 = vld [vmem:[%s486 + $0x84] sm:%s479]
                %523 = vst [vmem:[%s487 + $0x44] sm:%s479] %v522
                %v524 = vld [vmem:[%s486 + $0x88] sm:%s479]
                %525 = vst [vmem:[%s487 + $0x48] sm:%s479] %v524
                %v526 = vld [vmem:[%s486 + $0x8c] sm:%s479]
                %527 = vst [vmem:[%s487 + $0x4c] sm:%s479] %v526
                %v528 = vld [vmem:[%s486 + $0x90] sm:%s479]
                %529 = vst [vmem:[%s487 + $0x50] sm:%s479] %v528
                %v530 = vld [vmem:[%s486 + $0x94] sm:%s479]
                %531 = vst [vmem:[%s487 + $0x54] sm:%s479] %v530
                %v532 = vld [vmem:[%s486 + $0x98] sm:%s479]
                %533 = vst [vmem:[%s487 + $0x58] sm:%s479] %v532
                %v534 = vld [vmem:[%s486 + $0x9c] sm:%s479]
                %535 = vst [vmem:[%s487 + $0x5c] sm:%s479] %v534
                %v536 = vld [vmem:[%s486 + $0xa0] sm:%s479]
                %537 = vst [vmem:[%s487 + $0x60] sm:%s479] %v536
                %v538 = vld [vmem:[%s486 + $0xa4] sm:%s479]
                %539 = vst [vmem:[%s487 + $0x64] sm:%s479] %v538
                %v540 = vld [vmem:[%s486 + $0xa8] sm:%s479]
                %541 = vst [vmem:[%s487 + $0x68] sm:%s479] %v540
                %v542 = vld [vmem:[%s486 + $0xac] sm:%s479]
                %543 = vst [vmem:[%s487 + $0x6c] sm:%s479] %v542
                %v544 = vld [vmem:[%s486 + $0xb0] sm:%s479]
                %545 = vst [vmem:[%s487 + $0x70] sm:%s479] %v544
                %v546 = vld [vmem:[%s486 + $0xb4] sm:%s479]
                %547 = vst [vmem:[%s487 + $0x74] sm:%s479] %v546
                %v548 = vld [vmem:[%s486 + $0xb8] sm:%s479]
                %549 = vst [vmem:[%s487 + $0x78] sm:%s479] %v548
                %v550 = vld [vmem:[%s486 + $0xbc] sm:%s479]
                %551 = vst [vmem:[%s487 + $0x7c] sm:%s479] %v550
              $region123: #{tpu_custom_call.1} parent=117 // loop_footer
                %s485 = sadd.s32 1, %s481
              $region124: #{tpu_custom_call.1} parent=117 // loop_footer_branch
                %480 = sbr.rel target = $region120
              $region125: #{tpu_custom_call.1} parent=117 // loop_exit
                _
            $region118: #{tpu_custom_call.1} parent=109 // pred_fallthru
              _
          $region110: #{tpu_custom_call.1} parent=105 // pred_fallthru
            _
          %636 = vnop
        $region106: #{tpu_custom_call.1} parent=19 // pred_fallthru
          _
        // Predicated region
        $region144: #{tpu_custom_call.1} parent=19 // pred_check
          %p637 = pneg %p130
        $region145: #{tpu_custom_call.1} parent=19 // pred_check_branch
          %639 = sbr.rel (%p637) target = $region147
        $region146: #{tpu_custom_call.1} parent=19 // pred_region
          %s640 = sand.u32 %s120, 1
          %s641 = sand.u32 %s120, 1
          %s642 = smul.addr %s641, 64
          %s643 = scalar_lea.vmem [#allocation7], %s642
          %s644 = smul.addr %s27, 8
          %s645 = scalar_lea.vmem %s3, %s644
          // Predicated region
          $region148: #{tpu_custom_call.1} parent=146 // pred_check
            _
          $region149: #{tpu_custom_call.1} parent=146 // pred_check_branch
            %647 = sbr.rel (0) target = $region151
          $region150: #{tpu_custom_call.1} parent=146 // pred_region
            // Predicated region
            $region152: #{tpu_custom_call.1} parent=150 // pred_check
              _
            $region153: #{tpu_custom_call.1} parent=150 // pred_check_branch
              %649 = sbr.rel (0) target = $region155
            $region154: #{tpu_custom_call.1} parent=150 // pred_region
              // Predicated region
              $region167: #{tpu_custom_call.1} parent=154 // pred_check
                _
              $region168: #{tpu_custom_call.1} parent=154 // pred_check_branch
                %679 = sbr.rel (0) target = $region170
              $region169: #{tpu_custom_call.1} parent=154 // pred_region
                loop: start=0, step=1, limit=1
                $region171: #{tpu_custom_call.1} parent=169 // loop_pre_header
                  _
                $region172: #{tpu_custom_call.1} parent=169 // loop_header
                  %s681 = sphi 0, %s685
                  %p682 = scmp.ge.s32.totalorder %s681, 1
                  %s686 = sphi %s645, %s645
                  %s687 = sphi %s643, %s643
                $region173: #{tpu_custom_call.1} parent=169 // loop_header_branch
                  %684 = sbr.rel (%p682) target = $region177
                $region174: #{tpu_custom_call.1} parent=169 // loop_body
                  %v688 = vld [vmem:[%s686] sm:$0xff]
                  %689 = vst [vmem:[%s687] sm:$0xff] %v688
                  %v690 = vld [vmem:[%s686 + $0x10] sm:$0xff]
                  %691 = vst [vmem:[%s687 + $0x8] sm:$0xff] %v690
                  %v692 = vld [vmem:[%s686 + $0x20] sm:$0xff]
                  %693 = vst [vmem:[%s687 + $0x10] sm:$0xff] %v692
                  %v694 = vld [vmem:[%s686 + $0x30] sm:$0xff]
                  %695 = vst [vmem:[%s687 + $0x18] sm:$0xff] %v694
                  %v696 = vld [vmem:[%s686 + $0x40] sm:$0xff]
                  %697 = vst [vmem:[%s687 + $0x20] sm:$0xff] %v696
                  %v698 = vld [vmem:[%s686 + $0x50] sm:$0xff]
                  %699 = vst [vmem:[%s687 + $0x28] sm:$0xff] %v698
                  %v700 = vld [vmem:[%s686 + $0x60] sm:$0xff]
                  %701 = vst [vmem:[%s687 + $0x30] sm:$0xff] %v700
                  %v702 = vld [vmem:[%s686 + $0x70] sm:$0xff]
                  %703 = vst [vmem:[%s687 + $0x38] sm:$0xff] %v702
                $region175: #{tpu_custom_call.1} parent=169 // loop_footer
                  %s685 = sadd.s32 1, %s681
                $region176: #{tpu_custom_call.1} parent=169 // loop_footer_branch
                  %680 = sbr.rel target = $region172
                $region177: #{tpu_custom_call.1} parent=169 // loop_exit
                  _
              $region170: #{tpu_custom_call.1} parent=154 // pred_fallthru
                _
              // Predicated region
              $region178: #{tpu_custom_call.1} parent=154 // pred_check
                _
              $region179: #{tpu_custom_call.1} parent=154 // pred_check_branch
                %705 = sbr.rel target = $region181
              $region180: #{tpu_custom_call.1} parent=154 // pred_region
                _
              $region181: #{tpu_custom_call.1} parent=154 // pred_fallthru
                _
            $region155: #{tpu_custom_call.1} parent=150 // pred_fallthru
              _
            // Predicated region
            $region156: #{tpu_custom_call.1} parent=150 // pred_check
              _
            $region157: #{tpu_custom_call.1} parent=150 // pred_check_branch
              %651 = sbr.rel target = $region159
            $region158: #{tpu_custom_call.1} parent=150 // pred_region
              %s653 = ssub.s32 256, 1
              loop: start=0, step=1, limit=1
              $region160: #{tpu_custom_call.1} parent=158 // loop_pre_header
                _
              $region161: #{tpu_custom_call.1} parent=158 // loop_header
                %s655 = sphi 0, %s659
                %p656 = scmp.ge.s32.totalorder %s655, 1
                %s660 = sphi %s645, %s645
                %s661 = sphi %s643, %s643
              $region162: #{tpu_custom_call.1} parent=158 // loop_header_branch
                %658 = sbr.rel (%p656) target = $region166
              $region163: #{tpu_custom_call.1} parent=158 // loop_body
                %v662 = vld [vmem:[%s660] sm:%s653]
                %663 = vst [vmem:[%s661] sm:%s653] %v662
                %v664 = vld [vmem:[%s660 + $0x10] sm:%s653]
                %665 = vst [vmem:[%s661 + $0x8] sm:%s653] %v664
                %v666 = vld [vmem:[%s660 + $0x20] sm:%s653]
                %667 = vst [vmem:[%s661 + $0x10] sm:%s653] %v666
                %v668 = vld [vmem:[%s660 + $0x30] sm:%s653]
                %669 = vst [vmem:[%s661 + $0x18] sm:%s653] %v668
                %v670 = vld [vmem:[%s660 + $0x40] sm:%s653]
                %671 = vst [vmem:[%s661 + $0x20] sm:%s653] %v670
                %v672 = vld [vmem:[%s660 + $0x50] sm:%s653]
                %673 = vst [vmem:[%s661 + $0x28] sm:%s653] %v672
                %v674 = vld [vmem:[%s660 + $0x60] sm:%s653]
                %675 = vst [vmem:[%s661 + $0x30] sm:%s653] %v674
                %v676 = vld [vmem:[%s660 + $0x70] sm:%s653]
                %677 = vst [vmem:[%s661 + $0x38] sm:%s653] %v676
              $region164: #{tpu_custom_call.1} parent=158 // loop_footer
                %s659 = sadd.s32 1, %s655
              $region165: #{tpu_custom_call.1} parent=158 // loop_footer_branch
                %654 = sbr.rel target = $region161
              $region166: #{tpu_custom_call.1} parent=158 // loop_exit
                _
            $region159: #{tpu_custom_call.1} parent=150 // pred_fallthru
              _
          $region151: #{tpu_custom_call.1} parent=146 // pred_fallthru
            _
          %706 = vnop
        $region147: #{tpu_custom_call.1} parent=19 // pred_fallthru
          _
      $region20: #{tpu_custom_call.1} parent=5 // pred_fallthru
        _
      %p707 = scmp.le.s32.totalorder 1, %s20
      %p708 = scmp.lt.s32.totalorder %s20, 5
      %p709 = pnand %p707, %p708
      %p710 = pneg %p709
      // Predicated region
      $region182: #{tpu_custom_call.1} parent=5 // pred_check
        _
      $region183: #{tpu_custom_call.1} parent=5 // pred_check_branch
        %712 = sbr.rel (%p709) target = $region185
      $region184: #{tpu_custom_call.1} parent=5 // pred_region
        %s713 = ssub.s32 %s20, 1
        %s714 = sand.u32 %s45, 1
        %s715 = sand.u32 %s45, 1
        %s716 = smul.addr %s715, 128
        %s717 = scalar_lea.vmem [#allocation4], %s716
        // Predicated region
        $region186: #{tpu_custom_call.1} parent=184 // pred_check
          %p718 = pneg %p58
        $region187: #{tpu_custom_call.1} parent=184 // pred_check_branch
          %720 = sbr.rel (%p718) target = $region189
        $region188: #{tpu_custom_call.1} parent=184 // pred_region
          _
        $region189: #{tpu_custom_call.1} parent=184 // pred_fallthru
          _
        %s721 = sand.u32 %s71, 1
        %s722 = sand.u32 %s71, 1
        %s723 = smul.addr %s722, 8
        %s724 = scalar_lea.vmem [#allocation5], %s723
        // Predicated region
        $region190: #{tpu_custom_call.1} parent=184 // pred_check
          %p725 = pneg %p84
        $region191: #{tpu_custom_call.1} parent=184 // pred_check_branch
          %727 = sbr.rel (%p725) target = $region193
        $region192: #{tpu_custom_call.1} parent=184 // pred_region
          _
        $region193: #{tpu_custom_call.1} parent=184 // pred_fallthru
          _
        %s728 = sand.u32 %s97, 1
        %s729 = sand.u32 %s97, 1
        %s730 = smul.addr %s729, 128
        %s731 = scalar_lea.vmem [#allocation6], %s730
        // Predicated region
        $region194: #{tpu_custom_call.1} parent=184 // pred_check
          %p732 = pneg %p110
        $region195: #{tpu_custom_call.1} parent=184 // pred_check_branch
          %734 = sbr.rel (%p732) target = $region197
        $region196: #{tpu_custom_call.1} parent=184 // pred_region
          _
        $region197: #{tpu_custom_call.1} parent=184 // pred_fallthru
          _
        %s735 = sand.u32 %s123, 1
        %s736 = sand.u32 %s123, 1
        %s737 = smul.addr %s736, 64
        %s738 = scalar_lea.vmem [#allocation7], %s737
        // Predicated region
        $region198: #{tpu_custom_call.1} parent=184 // pred_check
          %p739 = pneg %p136
        $region199: #{tpu_custom_call.1} parent=184 // pred_check_branch
          %741 = sbr.rel (%p739) target = $region201
        $region200: #{tpu_custom_call.1} parent=184 // pred_region
          _
        $region201: #{tpu_custom_call.1} parent=184 // pred_fallthru
          _
        %s742 = sand.u32 %s45, 1
        %s743 = sand.u32 %s45, 1
        %s744 = smul.addr %s743, 128
        %s745 = scalar_lea.vmem [#allocation4], %s744
        %p746 = pneg %p58
        %p747 = pneg %p55
        %s748 = sand.u32 %s71, 1
        %s749 = sand.u32 %s71, 1
        %s750 = smul.addr %s749, 8
        %s751 = scalar_lea.vmem [#allocation5], %s750
        %p752 = pneg %p84
        %p753 = pneg %p81
        %s754 = sand.u32 %s97, 1
        %s755 = sand.u32 %s97, 1
        %s756 = smul.addr %s755, 128
        %s757 = scalar_lea.vmem [#allocation6], %s756
        %p758 = pneg %p110
        %p759 = pneg %p107
        %s760 = sand.u32 %s123, 1
        %s761 = sand.u32 %s123, 1
        %s762 = smul.addr %s761, 64
        %s763 = scalar_lea.vmem [#allocation7], %s762
        %p764 = pneg %p136
        %p765 = pneg %p133
        %p766 = pneg %p157
        %p767 = pneg %p154
        %p768 = pneg %p183
        %p769 = pneg %p180
        %s770 = sand.u32 %s170, 1
        %s771 = scalar_lea.sflag [#allocation9], %s770
        %s772 = sand.u32 %s170, 1
        %s773 = smul.addr %s772, 64
        %s774 = scalar_lea.vmem [#allocation8], %s773
        %p775 = pneg %p211
        %p776 = pneg %p208
        %s777 = sand.u32 %s198, 1
        %s778 = scalar_lea.sflag [#allocation11], %s777
        %s779 = sand.u32 %s198, 1
        %s780 = smul.addr %s779, 128
        %s781 = scalar_lea.vmem [#allocation10], %s780
        %s782 = smul.u32 16, %s29
        %s783 = smul.u32 16, %s30
        %s784 = smul.u32 16, %s29
        %p786 = scmp.eq.s32.totalorder %s30, 0
        // Predicated region
        $region202: #{tpu_custom_call.1} parent=184 // pred_check
          %p787 = pneg %p786
        $region203: #{tpu_custom_call.1} parent=184 // pred_check_branch
          %789 = sbr.rel (%p787) target = $region205
        $region204: #{tpu_custom_call.1} parent=184 // pred_region
          %vm790 = vcmask 261120
          %791 = vst.msk [vmem:[#allocation2] sm:$0xff] %vm790, 0.0
          %792 = vst.msk [vmem:[#allocation2 + $0x8] sm:$0xff] %vm790, 0.0
          %793 = vst.msk [vmem:[#allocation2 + $0x10] sm:$0xff] %vm790, 0.0
          %794 = vst.msk [vmem:[#allocation2 + $0x18] sm:$0xff] %vm790, 0.0
          %795 = vst.msk [vmem:[#allocation2 + $0x20] sm:$0xff] %vm790, 0.0
          %796 = vst.msk [vmem:[#allocation2 + $0x28] sm:$0xff] %vm790, 0.0
          %797 = vst.msk [vmem:[#allocation2 + $0x30] sm:$0xff] %vm790, 0.0
          %798 = vst.msk [vmem:[#allocation2 + $0x38] sm:$0xff] %vm790, 0.0
          %799 = vst.msk [vmem:[#allocation2 + $0x40] sm:$0xff] %vm790, 0.0
          %800 = vst.msk [vmem:[#allocation2 + $0x48] sm:$0xff] %vm790, 0.0
          %801 = vst.msk [vmem:[#allocation2 + $0x50] sm:$0xff] %vm790, 0.0
          %802 = vst.msk [vmem:[#allocation2 + $0x58] sm:$0xff] %vm790, 0.0
          %803 = vst.msk [vmem:[#allocation2 + $0x60] sm:$0xff] %vm790, 0.0
          %804 = vst.msk [vmem:[#allocation2 + $0x68] sm:$0xff] %vm790, 0.0
          %805 = vst.msk [vmem:[#allocation2 + $0x70] sm:$0xff] %vm790, 0.0
          %806 = vst.msk [vmem:[#allocation2 + $0x78] sm:$0xff] %vm790, 0.0
          %807 = vst.msk [vmem:[#allocation2 + $0x80] sm:$0xff] %vm790, 0.0
          %808 = vst.msk [vmem:[#allocation2 + $0x88] sm:$0xff] %vm790, 0.0
          %809 = vst.msk [vmem:[#allocation2 + $0x90] sm:$0xff] %vm790, 0.0
          %810 = vst.msk [vmem:[#allocation2 + $0x98] sm:$0xff] %vm790, 0.0
          %811 = vst.msk [vmem:[#allocation2 + $0xa0] sm:$0xff] %vm790, 0.0
          %812 = vst.msk [vmem:[#allocation2 + $0xa8] sm:$0xff] %vm790, 0.0
          %813 = vst.msk [vmem:[#allocation2 + $0xb0] sm:$0xff] %vm790, 0.0
          %814 = vst.msk [vmem:[#allocation2 + $0xb8] sm:$0xff] %vm790, 0.0
          %815 = vst.msk [vmem:[#allocation2 + $0xc0] sm:$0xff] %vm790, 0.0
          %816 = vst.msk [vmem:[#allocation2 + $0xc8] sm:$0xff] %vm790, 0.0
          %817 = vst.msk [vmem:[#allocation2 + $0xd0] sm:$0xff] %vm790, 0.0
          %818 = vst.msk [vmem:[#allocation2 + $0xd8] sm:$0xff] %vm790, 0.0
          %819 = vst.msk [vmem:[#allocation2 + $0xe0] sm:$0xff] %vm790, 0.0
          %820 = vst.msk [vmem:[#allocation2 + $0xe8] sm:$0xff] %vm790, 0.0
          %821 = vst.msk [vmem:[#allocation2 + $0xf0] sm:$0xff] %vm790, 0.0
          %822 = vst.msk [vmem:[#allocation2 + $0xf8] sm:$0xff] %vm790, 0.0
        $region205: #{tpu_custom_call.1} parent=184 // pred_fallthru
          _
        %v823 = vld [vmem:[%s717] sm:$0xf]
        %v824 = vld [vmem:[%s717 + $0x4] sm:$0xf]
        %v825 = vld [vmem:[%s717 + $0x8] sm:$0xf]
        %v826 = vld [vmem:[%s717 + $0xc] sm:$0xf]
        %v827 = vld [vmem:[%s717 + $0x10] sm:$0xf]
        %v828 = vld [vmem:[%s717 + $0x14] sm:$0xf]
        %v829 = vld [vmem:[%s717 + $0x18] sm:$0xf]
        %v830 = vld [vmem:[%s717 + $0x1c] sm:$0xf]
        %v831 = vld [vmem:[%s717 + $0x20] sm:$0xf]
        %v832 = vld [vmem:[%s717 + $0x24] sm:$0xf]
        %v833 = vld [vmem:[%s717 + $0x28] sm:$0xf]
        %v834 = vld [vmem:[%s717 + $0x2c] sm:$0xf]
        %v835 = vld [vmem:[%s717 + $0x30] sm:$0xf]
        %v836 = vld [vmem:[%s717 + $0x34] sm:$0xf]
        %v837 = vld [vmem:[%s717 + $0x38] sm:$0xf]
        %v838 = vld [vmem:[%s717 + $0x3c] sm:$0xf]
        %v839 = vld [vmem:[%s717 + $0x40] sm:$0xf]
        %v840 = vld [vmem:[%s717 + $0x44] sm:$0xf]
        %v841 = vld [vmem:[%s717 + $0x48] sm:$0xf]
        %v842 = vld [vmem:[%s717 + $0x4c] sm:$0xf]
        %v843 = vld [vmem:[%s717 + $0x50] sm:$0xf]
        %v844 = vld [vmem:[%s717 + $0x54] sm:$0xf]
        %v845 = vld [vmem:[%s717 + $0x58] sm:$0xf]
        %v846 = vld [vmem:[%s717 + $0x5c] sm:$0xf]
        %v847 = vld [vmem:[%s717 + $0x60] sm:$0xf]
        %v848 = vld [vmem:[%s717 + $0x64] sm:$0xf]
        %v849 = vld [vmem:[%s717 + $0x68] sm:$0xf]
        %v850 = vld [vmem:[%s717 + $0x6c] sm:$0xf]
        %v851 = vld [vmem:[%s717 + $0x70] sm:$0xf]
        %v852 = vld [vmem:[%s717 + $0x74] sm:$0xf]
        %v853 = vld [vmem:[%s717 + $0x78] sm:$0xf]
        %v854 = vld [vmem:[%s717 + $0x7c] sm:$0xf]
        %v855 = vld [vmem:[%s724] sm:$0xf]
        %v856 = vld [vmem:[%s724 + $0x4] sm:$0xf]
        %v873 = vunpack.c.l.b16 %v823
        %v874 = vunpack.c.l.b16 %v824
        %v875 = vunpack.c.l.b16 %v825
        %v876 = vunpack.c.l.b16 %v826
        %v877 = vunpack.c.l.b16 %v827
        %v878 = vunpack.c.l.b16 %v828
        %v879 = vunpack.c.l.b16 %v829
        %v880 = vunpack.c.l.b16 %v830
        %v881 = vunpack.c.l.b16 %v831
        %v882 = vunpack.c.l.b16 %v832
        %v883 = vunpack.c.l.b16 %v833
        %v884 = vunpack.c.l.b16 %v834
        %v885 = vunpack.c.l.b16 %v835
        %v886 = vunpack.c.l.b16 %v836
        %v887 = vunpack.c.l.b16 %v837
        %v888 = vunpack.c.l.b16 %v838
        %v889 = vpack.c.b16 %v874, %v873
        %v890 = vpack.c.b16 %v876, %v875
        %v891 = vpack.c.b16 %v878, %v877
        %v892 = vpack.c.b16 %v880, %v879
        %v893 = vpack.c.b16 %v882, %v881
        %v894 = vpack.c.b16 %v884, %v883
        %v895 = vpack.c.b16 %v886, %v885
        %v896 = vpack.c.b16 %v888, %v887
        %vm897 = vcmask 64512
        %v899 = vsel %vm897, %v889, 0
        %v902 = vsel %vm897, %v890, 0
        %v905 = vsel %vm897, %v891, 0
        %v908 = vsel %vm897, %v892, 0
        %v911 = vsel %vm897, %v893, 0
        %v914 = vsel %vm897, %v894, 0
        %v917 = vsel %vm897, %v895, 0
        %v920 = vsel %vm897, %v896, 0
        %vm922 = vcmask 1043456
        %v924 = vsel %vm922, %v855, 0
        %926 = vmatpush.bf16.msra.mxu0 0
        %927 = vmatpush.bf16.msra.mxu0 0
        %928 = vmatpush.bf16.msra.mxu0 0
        %929 = vmatpush.bf16.msra.mxu0 0
        %930 = vmatpush.bf16.msra.mxu0 0
        %931 = vmatpush.bf16.msra.mxu0 0
        %932 = vmatpush.bf16.msra.mxu0 0
        %933 = vmatpush.bf16.msra.mxu0 %v924
        %934 = vmatmul.bf16.gmra.mxu0 %v899
        %v935 = vpop.f32.mrf.mxu0
        %v936 = vadd.f32 0.0, %v935
        %v937 = vpop.f32.mrf.mxu0
        %v938 = vadd.f32 0.0, %v937
        %939 = vmatmul.bf16.gmra.mxu0 %v902
        %v940 = vpop.f32.mrf.mxu0
        %v941 = vadd.f32 0.0, %v940
        %v942 = vpop.f32.mrf.mxu0
        %v943 = vadd.f32 0.0, %v942
        %944 = vmatmul.bf16.gmra.mxu0 %v905
        %v945 = vpop.f32.mrf.mxu0
        %v946 = vadd.f32 0.0, %v945
        %v947 = vpop.f32.mrf.mxu0
        %v948 = vadd.f32 0.0, %v947
        %949 = vmatmul.bf16.gmra.mxu0 %v908
        %v950 = vpop.f32.mrf.mxu0
        %v951 = vadd.f32 0.0, %v950
        %v952 = vpop.f32.mrf.mxu0
        %v953 = vadd.f32 0.0, %v952
        %954 = vmatmul.bf16.gmra.mxu0 %v911
        %v955 = vpop.f32.mrf.mxu0
        %v956 = vadd.f32 0.0, %v955
        %v957 = vpop.f32.mrf.mxu0
        %v958 = vadd.f32 0.0, %v957
        %959 = vmatmul.bf16.gmra.mxu0 %v914
        %v960 = vpop.f32.mrf.mxu0
        %v961 = vadd.f32 0.0, %v960
        %v962 = vpop.f32.mrf.mxu0
        %v963 = vadd.f32 0.0, %v962
        %964 = vmatmul.bf16.gmra.mxu0 %v917
        %v965 = vpop.f32.mrf.mxu0
        %v966 = vadd.f32 0.0, %v965
        %v967 = vpop.f32.mrf.mxu0
        %v968 = vadd.f32 0.0, %v967
        %969 = vmatmul.bf16.gmra.mxu0 %v920
        %v970 = vpop.f32.mrf.mxu0
        %v971 = vadd.f32 0.0, %v970
        %v972 = vpop.f32.mrf.mxu0
        %v973 = vadd.f32 0.0, %v972
        %974 = vdwg.mxu0
        %v991 = vunpack.c.l.b16 %v839
        %v992 = vunpack.c.l.b16 %v840
        %v993 = vunpack.c.l.b16 %v841
        %v994 = vunpack.c.l.b16 %v842
        %v995 = vunpack.c.l.b16 %v843
        %v996 = vunpack.c.l.b16 %v844
        %v997 = vunpack.c.l.b16 %v845
        %v998 = vunpack.c.l.b16 %v846
        %v999 = vunpack.c.l.b16 %v847
        %v1000 = vunpack.c.l.b16 %v848
        %v1001 = vunpack.c.l.b16 %v849
        %v1002 = vunpack.c.l.b16 %v850
        %v1003 = vunpack.c.l.b16 %v851
        %v1004 = vunpack.c.l.b16 %v852
        %v1005 = vunpack.c.l.b16 %v853
        %v1006 = vunpack.c.l.b16 %v854
        %v1007 = vpack.c.b16 %v992, %v991
        %v1008 = vpack.c.b16 %v994, %v993
        %v1009 = vpack.c.b16 %v996, %v995
        %v1010 = vpack.c.b16 %v998, %v997
        %v1011 = vpack.c.b16 %v1000, %v999
        %v1012 = vpack.c.b16 %v1002, %v1001
        %v1013 = vpack.c.b16 %v1004, %v1003
        %v1014 = vpack.c.b16 %v1006, %v1005
        %v1016 = vsel %vm897, %v1007, 0
        %v1019 = vsel %vm897, %v1008, 0
        %v1022 = vsel %vm897, %v1009, 0
        %v1025 = vsel %vm897, %v1010, 0
        %v1028 = vsel %vm897, %v1011, 0
        %v1031 = vsel %vm897, %v1012, 0
        %v1034 = vsel %vm897, %v1013, 0
        %v1037 = vsel %vm897, %v1014, 0
        %v1040 = vsel %vm922, %v856, 0
        %1042 = vmatpush.bf16.msra.mxu0 0
        %1043 = vmatpush.bf16.msra.mxu0 0
        %1044 = vmatpush.bf16.msra.mxu0 0
        %1045 = vmatpush.bf16.msra.mxu0 0
        %1046 = vmatpush.bf16.msra.mxu0 0
        %1047 = vmatpush.bf16.msra.mxu0 0
        %1048 = vmatpush.bf16.msra.mxu0 0
        %1049 = vmatpush.bf16.msra.mxu0 %v1040
        %1050 = vmatmul.bf16.gmra.mxu0 %v1016
        %v1051 = vpop.f32.mrf.mxu0
        %v1052 = vadd.f32 0.0, %v1051
        %v1053 = vpop.f32.mrf.mxu0
        %v1054 = vadd.f32 0.0, %v1053
        %1055 = vmatmul.bf16.gmra.mxu0 %v1019
        %v1056 = vpop.f32.mrf.mxu0
        %v1057 = vadd.f32 0.0, %v1056
        %v1058 = vpop.f32.mrf.mxu0
        %v1059 = vadd.f32 0.0, %v1058
        %1060 = vmatmul.bf16.gmra.mxu0 %v1022
        %v1061 = vpop.f32.mrf.mxu0
        %v1062 = vadd.f32 0.0, %v1061
        %v1063 = vpop.f32.mrf.mxu0
        %v1064 = vadd.f32 0.0, %v1063
        %1065 = vmatmul.bf16.gmra.mxu0 %v1025
        %v1066 = vpop.f32.mrf.mxu0
        %v1067 = vadd.f32 0.0, %v1066
        %v1068 = vpop.f32.mrf.mxu0
        %v1069 = vadd.f32 0.0, %v1068
        %1070 = vmatmul.bf16.gmra.mxu0 %v1028
        %v1071 = vpop.f32.mrf.mxu0
        %v1072 = vadd.f32 0.0, %v1071
        %v1073 = vpop.f32.mrf.mxu0
        %v1074 = vadd.f32 0.0, %v1073
        %1075 = vmatmul.bf16.gmra.mxu0 %v1031
        %v1076 = vpop.f32.mrf.mxu0
        %v1077 = vadd.f32 0.0, %v1076
        %v1078 = vpop.f32.mrf.mxu0
        %v1079 = vadd.f32 0.0, %v1078
        %1080 = vmatmul.bf16.gmra.mxu0 %v1034
        %v1081 = vpop.f32.mrf.mxu0
        %v1082 = vadd.f32 0.0, %v1081
        %v1083 = vpop.f32.mrf.mxu0
        %v1084 = vadd.f32 0.0, %v1083
        %1085 = vmatmul.bf16.gmra.mxu0 %v1037
        %v1086 = vpop.f32.mrf.mxu0
        %v1087 = vadd.f32 0.0, %v1086
        %v1088 = vpop.f32.mrf.mxu0
        %v1089 = vadd.f32 0.0, %v1088
        %1090 = vdwg.mxu0
        %v1091 = vsub.f32 %v1052, %v936
        %v1092 = vsub.f32 %v1054, %v938
        %v1093 = vsub.f32 %v1057, %v941
        %v1094 = vsub.f32 %v1059, %v943
        %v1095 = vsub.f32 %v1062, %v946
        %v1096 = vsub.f32 %v1064, %v948
        %v1097 = vsub.f32 %v1067, %v951
        %v1098 = vsub.f32 %v1069, %v953
        %v1099 = vsub.f32 %v1072, %v956
        %v1100 = vsub.f32 %v1074, %v958
        %v1101 = vsub.f32 %v1077, %v961
        %v1102 = vsub.f32 %v1079, %v963
        %v1103 = vsub.f32 %v1082, %v966
        %v1104 = vsub.f32 %v1084, %v968
        %v1105 = vsub.f32 %v1087, %v971
        %v1106 = vsub.f32 %v1089, %v973
        %v1107 = vmul.f32 %v1091, 1.442695
        %v1108 = vpow.pop %v1107
        %v1109 = vmul.f32 %v1092, 1.442695
        %v1110 = vpow.pop %v1109
        %v1111 = vmul.f32 %v1093, 1.442695
        %v1112 = vpow.pop %v1111
        %v1113 = vmul.f32 %v1094, 1.442695
        %v1114 = vpow.pop %v1113
        %v1115 = vmul.f32 %v1095, 1.442695
        %v1116 = vpow.pop %v1115
        %v1117 = vmul.f32 %v1096, 1.442695
        %v1118 = vpow.pop %v1117
        %v1119 = vmul.f32 %v1097, 1.442695
        %v1120 = vpow.pop %v1119
        %v1121 = vmul.f32 %v1098, 1.442695
        %v1122 = vpow.pop %v1121
        %v1123 = vmul.f32 %v1099, 1.442695
        %v1124 = vpow.pop %v1123
        %v1125 = vmul.f32 %v1100, 1.442695
        %v1126 = vpow.pop %v1125
        %v1127 = vmul.f32 %v1101, 1.442695
        %v1128 = vpow.pop %v1127
        %v1129 = vmul.f32 %v1102, 1.442695
        %v1130 = vpow.pop %v1129
        %v1131 = vmul.f32 %v1103, 1.442695
        %v1132 = vpow.pop %v1131
        %v1133 = vmul.f32 %v1104, 1.442695
        %v1134 = vpow.pop %v1133
        %v1135 = vmul.f32 %v1105, 1.442695
        %v1136 = vpow.pop %v1135
        %v1137 = vmul.f32 %v1106, 1.442695
        %v1138 = vpow.pop %v1137
        %v1139 = vadd.f32 %v1108, 1.0
        %v1140 = vadd.f32 %v1110, 1.0
        %v1141 = vadd.f32 %v1112, 1.0
        %v1142 = vadd.f32 %v1114, 1.0
        %v1143 = vadd.f32 %v1116, 1.0
        %v1144 = vadd.f32 %v1118, 1.0
        %v1145 = vadd.f32 %v1120, 1.0
        %v1146 = vadd.f32 %v1122, 1.0
        %v1147 = vadd.f32 %v1124, 1.0
        %v1148 = vadd.f32 %v1126, 1.0
        %v1149 = vadd.f32 %v1128, 1.0
        %v1150 = vadd.f32 %v1130, 1.0
        %v1151 = vadd.f32 %v1132, 1.0
        %v1152 = vadd.f32 %v1134, 1.0
        %v1153 = vadd.f32 %v1136, 1.0
        %v1154 = vadd.f32 %v1138, 1.0
        %v1155 = vrcp.pop %v1139
        %v1156 = vrcp.pop %v1140
        %v1157 = vrcp.pop %v1141
        %v1158 = vrcp.pop %v1142
        %v1159 = vrcp.pop %v1143
        %v1160 = vrcp.pop %v1144
        %v1161 = vrcp.pop %v1145
        %v1162 = vrcp.pop %v1146
        %v1163 = vrcp.pop %v1147
        %v1164 = vrcp.pop %v1148
        %v1165 = vrcp.pop %v1149
        %v1166 = vrcp.pop %v1150
        %v1167 = vrcp.pop %v1151
        %v1168 = vrcp.pop %v1152
        %v1169 = vrcp.pop %v1153
        %v1170 = vrcp.pop %v1154
        %v1171 = vsub.f32 1.0, %v1155
        %v1172 = vsub.f32 1.0, %v1156
        %v1173 = vsub.f32 1.0, %v1157
        %v1174 = vsub.f32 1.0, %v1158
        %v1175 = vsub.f32 1.0, %v1159
        %v1176 = vsub.f32 1.0, %v1160
        %v1177 = vsub.f32 1.0, %v1161
        %v1178 = vsub.f32 1.0, %v1162
        %v1179 = vsub.f32 1.0, %v1163
        %v1180 = vsub.f32 1.0, %v1164
        %v1181 = vsub.f32 1.0, %v1165
        %v1182 = vsub.f32 1.0, %v1166
        %v1183 = vsub.f32 1.0, %v1167
        %v1184 = vsub.f32 1.0, %v1168
        %v1185 = vsub.f32 1.0, %v1169
        %v1186 = vsub.f32 1.0, %v1170
        %v1187 = vpack.c.bf16 %v1155, %v1155
        %v1188 = vpack.c.bf16 %v1156, %v1156
        %v1189 = vpack.c.bf16 %v1157, %v1157
        %v1190 = vpack.c.bf16 %v1158, %v1158
        %v1191 = vpack.c.bf16 %v1159, %v1159
        %v1192 = vpack.c.bf16 %v1160, %v1160
        %v1193 = vpack.c.bf16 %v1161, %v1161
        %v1194 = vpack.c.bf16 %v1162, %v1162
        %v1195 = vpack.c.bf16 %v1163, %v1163
        %v1196 = vpack.c.bf16 %v1164, %v1164
        %v1197 = vpack.c.bf16 %v1165, %v1165
        %v1198 = vpack.c.bf16 %v1166, %v1166
        %v1199 = vpack.c.bf16 %v1167, %v1167
        %v1200 = vpack.c.bf16 %v1168, %v1168
        %v1201 = vpack.c.bf16 %v1169, %v1169
        %v1202 = vpack.c.bf16 %v1170, %v1170
        %v1203 = vpack.c.bf16 %v1171, %v1171
        %v1204 = vpack.c.bf16 %v1172, %v1172
        %v1205 = vpack.c.bf16 %v1173, %v1173
        %v1206 = vpack.c.bf16 %v1174, %v1174
        %v1207 = vpack.c.bf16 %v1175, %v1175
        %v1208 = vpack.c.bf16 %v1176, %v1176
        %v1209 = vpack.c.bf16 %v1177, %v1177
        %v1210 = vpack.c.bf16 %v1178, %v1178
        %v1211 = vpack.c.bf16 %v1179, %v1179
        %v1212 = vpack.c.bf16 %v1180, %v1180
        %v1213 = vpack.c.bf16 %v1181, %v1181
        %v1214 = vpack.c.bf16 %v1182, %v1182
        %v1215 = vpack.c.bf16 %v1183, %v1183
        %v1216 = vpack.c.bf16 %v1184, %v1184
        %v1217 = vpack.c.bf16 %v1185, %v1185
        %v1218 = vpack.c.bf16 %v1186, %v1186
        %1219 = vst [vmem:[%s781] sm:$0xf] %v1187
        %1220 = vst [vmem:[%s781 + $0x4] sm:$0xf] %v1188
        %1221 = vst [vmem:[%s781 + $0x8] sm:$0xf] %v1189
        %1222 = vst [vmem:[%s781 + $0xc] sm:$0xf] %v1190
        %1223 = vst [vmem:[%s781 + $0x10] sm:$0xf] %v1191
        %1224 = vst [vmem:[%s781 + $0x14] sm:$0xf] %v1192
        %1225 = vst [vmem:[%s781 + $0x18] sm:$0xf] %v1193
        %1226 = vst [vmem:[%s781 + $0x1c] sm:$0xf] %v1194
        %1227 = vst [vmem:[%s781 + $0x20] sm:$0xf] %v1195
        %1228 = vst [vmem:[%s781 + $0x24] sm:$0xf] %v1196
        %1229 = vst [vmem:[%s781 + $0x28] sm:$0xf] %v1197
        %1230 = vst [vmem:[%s781 + $0x2c] sm:$0xf] %v1198
        %1231 = vst [vmem:[%s781 + $0x30] sm:$0xf] %v1199
        %1232 = vst [vmem:[%s781 + $0x34] sm:$0xf] %v1200
        %1233 = vst [vmem:[%s781 + $0x38] sm:$0xf] %v1201
        %1234 = vst [vmem:[%s781 + $0x3c] sm:$0xf] %v1202
        %1235 = vst [vmem:[%s781 + $0x40] sm:$0xf] %v1203
        %1236 = vst [vmem:[%s781 + $0x44] sm:$0xf] %v1204
        %1237 = vst [vmem:[%s781 + $0x48] sm:$0xf] %v1205
        %1238 = vst [vmem:[%s781 + $0x4c] sm:$0xf] %v1206
        %1239 = vst [vmem:[%s781 + $0x50] sm:$0xf] %v1207
        %1240 = vst [vmem:[%s781 + $0x54] sm:$0xf] %v1208
        %1241 = vst [vmem:[%s781 + $0x58] sm:$0xf] %v1209
        %1242 = vst [vmem:[%s781 + $0x5c] sm:$0xf] %v1210
        %1243 = vst [vmem:[%s781 + $0x60] sm:$0xf] %v1211
        %1244 = vst [vmem:[%s781 + $0x64] sm:$0xf] %v1212
        %1245 = vst [vmem:[%s781 + $0x68] sm:$0xf] %v1213
        %1246 = vst [vmem:[%s781 + $0x6c] sm:$0xf] %v1214
        %1247 = vst [vmem:[%s781 + $0x70] sm:$0xf] %v1215
        %1248 = vst [vmem:[%s781 + $0x74] sm:$0xf] %v1216
        %1249 = vst [vmem:[%s781 + $0x78] sm:$0xf] %v1217
        %1250 = vst [vmem:[%s781 + $0x7c] sm:$0xf] %v1218
        %v1251 = vld [vmem:[#allocation2] sm:$0xff]
        %v1252 = vld [vmem:[#allocation2 + $0x8] sm:$0xff]
        %v1253 = vld [vmem:[#allocation2 + $0x10] sm:$0xff]
        %v1254 = vld [vmem:[#allocation2 + $0x18] sm:$0xff]
        %v1255 = vld [vmem:[#allocation2 + $0x20] sm:$0xff]
        %v1256 = vld [vmem:[#allocation2 + $0x28] sm:$0xff]
        %v1257 = vld [vmem:[#allocation2 + $0x30] sm:$0xff]
        %v1258 = vld [vmem:[#allocation2 + $0x38] sm:$0xff]
        %v1259 = vld [vmem:[#allocation2 + $0x40] sm:$0xff]
        %v1260 = vld [vmem:[#allocation2 + $0x48] sm:$0xff]
        %v1261 = vld [vmem:[#allocation2 + $0x50] sm:$0xff]
        %v1262 = vld [vmem:[#allocation2 + $0x58] sm:$0xff]
        %v1263 = vld [vmem:[#allocation2 + $0x60] sm:$0xff]
        %v1264 = vld [vmem:[#allocation2 + $0x68] sm:$0xff]
        %v1265 = vld [vmem:[#allocation2 + $0x70] sm:$0xff]
        %v1266 = vld [vmem:[#allocation2 + $0x78] sm:$0xff]
        %v1267 = vld [vmem:[#allocation2 + $0x80] sm:$0xff]
        %v1268 = vld [vmem:[#allocation2 + $0x88] sm:$0xff]
        %v1269 = vld [vmem:[#allocation2 + $0x90] sm:$0xff]
        %v1270 = vld [vmem:[#allocation2 + $0x98] sm:$0xff]
        %v1271 = vld [vmem:[#allocation2 + $0xa0] sm:$0xff]
        %v1272 = vld [vmem:[#allocation2 + $0xa8] sm:$0xff]
        %v1273 = vld [vmem:[#allocation2 + $0xb0] sm:$0xff]
        %v1274 = vld [vmem:[#allocation2 + $0xb8] sm:$0xff]
        %v1275 = vld [vmem:[#allocation2 + $0xc0] sm:$0xff]
        %v1276 = vld [vmem:[#allocation2 + $0xc8] sm:$0xff]
        %v1277 = vld [vmem:[#allocation2 + $0xd0] sm:$0xff]
        %v1278 = vld [vmem:[#allocation2 + $0xd8] sm:$0xff]
        %v1279 = vld [vmem:[#allocation2 + $0xe0] sm:$0xff]
        %v1280 = vld [vmem:[#allocation2 + $0xe8] sm:$0xff]
        %v1281 = vld [vmem:[#allocation2 + $0xf0] sm:$0xff]
        %v1282 = vld [vmem:[#allocation2 + $0xf8] sm:$0xff]
        %v1283 = vld [vmem:[%s731] sm:$0xf]
        %v1284 = vld [vmem:[%s731 + $0x4] sm:$0xf]
        %v1285 = vld [vmem:[%s731 + $0x8] sm:$0xf]
        %v1286 = vld [vmem:[%s731 + $0xc] sm:$0xf]
        %v1287 = vld [vmem:[%s731 + $0x10] sm:$0xf]
        %v1288 = vld [vmem:[%s731 + $0x14] sm:$0xf]
        %v1289 = vld [vmem:[%s731 + $0x18] sm:$0xf]
        %v1290 = vld [vmem:[%s731 + $0x1c] sm:$0xf]
        %v1291 = vld [vmem:[%s731 + $0x20] sm:$0xf]
        %v1292 = vld [vmem:[%s731 + $0x24] sm:$0xf]
        %v1293 = vld [vmem:[%s731 + $0x28] sm:$0xf]
        %v1294 = vld [vmem:[%s731 + $0x2c] sm:$0xf]
        %v1295 = vld [vmem:[%s731 + $0x30] sm:$0xf]
        %v1296 = vld [vmem:[%s731 + $0x34] sm:$0xf]
        %v1297 = vld [vmem:[%s731 + $0x38] sm:$0xf]
        %v1298 = vld [vmem:[%s731 + $0x3c] sm:$0xf]
        %v1299 = vld [vmem:[%s731 + $0x40] sm:$0xf]
        %v1300 = vld [vmem:[%s731 + $0x44] sm:$0xf]
        %v1301 = vld [vmem:[%s731 + $0x48] sm:$0xf]
        %v1302 = vld [vmem:[%s731 + $0x4c] sm:$0xf]
        %v1303 = vld [vmem:[%s731 + $0x50] sm:$0xf]
        %v1304 = vld [vmem:[%s731 + $0x54] sm:$0xf]
        %v1305 = vld [vmem:[%s731 + $0x58] sm:$0xf]
        %v1306 = vld [vmem:[%s731 + $0x5c] sm:$0xf]
        %v1307 = vld [vmem:[%s731 + $0x60] sm:$0xf]
        %v1308 = vld [vmem:[%s731 + $0x64] sm:$0xf]
        %v1309 = vld [vmem:[%s731 + $0x68] sm:$0xf]
        %v1310 = vld [vmem:[%s731 + $0x6c] sm:$0xf]
        %v1311 = vld [vmem:[%s731 + $0x70] sm:$0xf]
        %v1312 = vld [vmem:[%s731 + $0x74] sm:$0xf]
        %v1313 = vld [vmem:[%s731 + $0x78] sm:$0xf]
        %v1314 = vld [vmem:[%s731 + $0x7c] sm:$0xf]
        %v1331 = vunpack.c.l.b16 %v1187
        %v1332 = vunpack.c.l.b16 %v1188
        %v1333 = vunpack.c.l.b16 %v1189
        %v1334 = vunpack.c.l.b16 %v1190
        %v1335 = vunpack.c.l.b16 %v1191
        %v1336 = vunpack.c.l.b16 %v1192
        %v1337 = vunpack.c.l.b16 %v1193
        %v1338 = vunpack.c.l.b16 %v1194
        %v1339 = vunpack.c.l.b16 %v1195
        %v1340 = vunpack.c.l.b16 %v1196
        %v1341 = vunpack.c.l.b16 %v1197
        %v1342 = vunpack.c.l.b16 %v1198
        %v1343 = vunpack.c.l.b16 %v1199
        %v1344 = vunpack.c.l.b16 %v1200
        %v1345 = vunpack.c.l.b16 %v1201
        %v1346 = vunpack.c.l.b16 %v1202
        %v1347 = vpack.c.b16 %v1332, %v1331
        %v1348 = vpack.c.b16 %v1334, %v1333
        %v1349 = vpack.c.b16 %v1336, %v1335
        %v1350 = vpack.c.b16 %v1338, %v1337
        %v1351 = vpack.c.b16 %v1340, %v1339
        %v1352 = vpack.c.b16 %v1342, %v1341
        %v1353 = vpack.c.b16 %v1344, %v1343
        %v1354 = vpack.c.b16 %v1346, %v1345
        %v1379 = vunpack.c.l.b16 %v1283
        %v1380 = vunpack.c.l.b16 %v1284
        %v1381 = vunpack.c.l.b16 %v1285
        %v1382 = vunpack.c.l.b16 %v1286
        %v1383 = vunpack.c.l.b16 %v1287
        %v1384 = vunpack.c.l.b16 %v1288
        %v1385 = vunpack.c.l.b16 %v1289
        %v1386 = vunpack.c.l.b16 %v1290
        %v1387 = vunpack.c.l.b16 %v1291
        %v1388 = vunpack.c.l.b16 %v1292
        %v1389 = vunpack.c.l.b16 %v1293
        %v1390 = vunpack.c.l.b16 %v1294
        %v1391 = vunpack.c.l.b16 %v1295
        %v1392 = vunpack.c.l.b16 %v1296
        %v1393 = vunpack.c.l.b16 %v1297
        %v1394 = vunpack.c.l.b16 %v1298
        %v1395 = vpack.c.b16 %v1380, %v1379
        %v1396 = vpack.c.b16 %v1382, %v1381
        %v1397 = vpack.c.b16 %v1384, %v1383
        %v1398 = vpack.c.b16 %v1386, %v1385
        %v1399 = vpack.c.b16 %v1388, %v1387
        %v1400 = vpack.c.b16 %v1390, %v1389
        %v1401 = vpack.c.b16 %v1392, %v1391
        %v1402 = vpack.c.b16 %v1394, %v1393
        %1411 = vmatpush.bf16.msra.mxu0 %v1402
        %1412 = vmatpush.bf16.msra.mxu0 %v1401
        %1413 = vmatpush.bf16.msra.mxu0 %v1400
        %1414 = vmatpush.bf16.msra.mxu0 %v1399
        %1415 = vmatpush.bf16.msra.mxu0 %v1398
        %1416 = vmatpush.bf16.msra.mxu0 %v1397
        %1417 = vmatpush.bf16.msra.mxu0 %v1396
        %1418 = vmatpush.bf16.msra.mxu0 %v1395
        %1419 = vmatmul.bf16.gmra.mxu0 %v1347
        %v1420 = vpop.f32.mrf.mxu0
        %v1421 = vadd.f32 0.0, %v1420
        %v1422 = vpop.f32.mrf.mxu0
        %v1423 = vadd.f32 0.0, %v1422
        %1424 = vmatmul.bf16.gmra.mxu0 %v1348
        %v1425 = vpop.f32.mrf.mxu0
        %v1426 = vadd.f32 0.0, %v1425
        %v1427 = vpop.f32.mrf.mxu0
        %v1428 = vadd.f32 0.0, %v1427
        %1429 = vmatmul.bf16.gmra.mxu0 %v1349
        %v1430 = vpop.f32.mrf.mxu0
        %v1431 = vadd.f32 0.0, %v1430
        %v1432 = vpop.f32.mrf.mxu0
        %v1433 = vadd.f32 0.0, %v1432
        %1434 = vmatmul.bf16.gmra.mxu0 %v1350
        %v1435 = vpop.f32.mrf.mxu0
        %v1436 = vadd.f32 0.0, %v1435
        %v1437 = vpop.f32.mrf.mxu0
        %v1438 = vadd.f32 0.0, %v1437
        %1439 = vmatmul.bf16.gmra.mxu0 %v1351
        %v1440 = vpop.f32.mrf.mxu0
        %v1441 = vadd.f32 0.0, %v1440
        %v1442 = vpop.f32.mrf.mxu0
        %v1443 = vadd.f32 0.0, %v1442
        %1444 = vmatmul.bf16.gmra.mxu0 %v1352
        %v1445 = vpop.f32.mrf.mxu0
        %v1446 = vadd.f32 0.0, %v1445
        %v1447 = vpop.f32.mrf.mxu0
        %v1448 = vadd.f32 0.0, %v1447
        %1449 = vmatmul.bf16.gmra.mxu0 %v1353
        %v1450 = vpop.f32.mrf.mxu0
        %v1451 = vadd.f32 0.0, %v1450
        %v1452 = vpop.f32.mrf.mxu0
        %v1453 = vadd.f32 0.0, %v1452
        %1454 = vmatmul.bf16.gmra.mxu0 %v1354
        %v1455 = vpop.f32.mrf.mxu0
        %v1456 = vadd.f32 0.0, %v1455
        %v1457 = vpop.f32.mrf.mxu0
        %v1458 = vadd.f32 0.0, %v1457
        %1459 = vdwg.mxu0
        %v1476 = vunpack.c.l.b16 %v1203
        %v1477 = vunpack.c.l.b16 %v1204
        %v1478 = vunpack.c.l.b16 %v1205
        %v1479 = vunpack.c.l.b16 %v1206
        %v1480 = vunpack.c.l.b16 %v1207
        %v1481 = vunpack.c.l.b16 %v1208
        %v1482 = vunpack.c.l.b16 %v1209
        %v1483 = vunpack.c.l.b16 %v1210
        %v1484 = vunpack.c.l.b16 %v1211
        %v1485 = vunpack.c.l.b16 %v1212
        %v1486 = vunpack.c.l.b16 %v1213
        %v1487 = vunpack.c.l.b16 %v1214
        %v1488 = vunpack.c.l.b16 %v1215
        %v1489 = vunpack.c.l.b16 %v1216
        %v1490 = vunpack.c.l.b16 %v1217
        %v1491 = vunpack.c.l.b16 %v1218
        %v1492 = vpack.c.b16 %v1477, %v1476
        %v1493 = vpack.c.b16 %v1479, %v1478
        %v1494 = vpack.c.b16 %v1481, %v1480
        %v1495 = vpack.c.b16 %v1483, %v1482
        %v1496 = vpack.c.b16 %v1485, %v1484
        %v1497 = vpack.c.b16 %v1487, %v1486
        %v1498 = vpack.c.b16 %v1489, %v1488
        %v1499 = vpack.c.b16 %v1491, %v1490
        %v1524 = vunpack.c.l.b16 %v1299
        %v1525 = vunpack.c.l.b16 %v1300
        %v1526 = vunpack.c.l.b16 %v1301
        %v1527 = vunpack.c.l.b16 %v1302
        %v1528 = vunpack.c.l.b16 %v1303
        %v1529 = vunpack.c.l.b16 %v1304
        %v1530 = vunpack.c.l.b16 %v1305
        %v1531 = vunpack.c.l.b16 %v1306
        %v1532 = vunpack.c.l.b16 %v1307
        %v1533 = vunpack.c.l.b16 %v1308
        %v1534 = vunpack.c.l.b16 %v1309
        %v1535 = vunpack.c.l.b16 %v1310
        %v1536 = vunpack.c.l.b16 %v1311
        %v1537 = vunpack.c.l.b16 %v1312
        %v1538 = vunpack.c.l.b16 %v1313
        %v1539 = vunpack.c.l.b16 %v1314
        %v1540 = vpack.c.b16 %v1525, %v1524
        %v1541 = vpack.c.b16 %v1527, %v1526
        %v1542 = vpack.c.b16 %v1529, %v1528
        %v1543 = vpack.c.b16 %v1531, %v1530
        %v1544 = vpack.c.b16 %v1533, %v1532
        %v1545 = vpack.c.b16 %v1535, %v1534
        %v1546 = vpack.c.b16 %v1537, %v1536
        %v1547 = vpack.c.b16 %v1539, %v1538
        %1556 = vmatpush.bf16.msra.mxu0 %v1547
        %1557 = vmatpush.bf16.msra.mxu0 %v1546
        %1558 = vmatpush.bf16.msra.mxu0 %v1545
        %1559 = vmatpush.bf16.msra.mxu0 %v1544
        %1560 = vmatpush.bf16.msra.mxu0 %v1543
        %1561 = vmatpush.bf16.msra.mxu0 %v1542
        %1562 = vmatpush.bf16.msra.mxu0 %v1541
        %1563 = vmatpush.bf16.msra.mxu0 %v1540
        %1564 = vmatmul.bf16.gmra.mxu0 %v1492
        %v1565 = vpop.f32.mrf.mxu0
        %v1566 = vadd.f32 0.0, %v1565
        %v1567 = vpop.f32.mrf.mxu0
        %v1568 = vadd.f32 0.0, %v1567
        %1569 = vmatmul.bf16.gmra.mxu0 %v1493
        %v1570 = vpop.f32.mrf.mxu0
        %v1571 = vadd.f32 0.0, %v1570
        %v1572 = vpop.f32.mrf.mxu0
        %v1573 = vadd.f32 0.0, %v1572
        %1574 = vmatmul.bf16.gmra.mxu0 %v1494
        %v1575 = vpop.f32.mrf.mxu0
        %v1576 = vadd.f32 0.0, %v1575
        %v1577 = vpop.f32.mrf.mxu0
        %v1578 = vadd.f32 0.0, %v1577
        %1579 = vmatmul.bf16.gmra.mxu0 %v1495
        %v1580 = vpop.f32.mrf.mxu0
        %v1581 = vadd.f32 0.0, %v1580
        %v1582 = vpop.f32.mrf.mxu0
        %v1583 = vadd.f32 0.0, %v1582
        %1584 = vmatmul.bf16.gmra.mxu0 %v1496
        %v1585 = vpop.f32.mrf.mxu0
        %v1586 = vadd.f32 0.0, %v1585
        %v1587 = vpop.f32.mrf.mxu0
        %v1588 = vadd.f32 0.0, %v1587
        %1589 = vmatmul.bf16.gmra.mxu0 %v1497
        %v1590 = vpop.f32.mrf.mxu0
        %v1591 = vadd.f32 0.0, %v1590
        %v1592 = vpop.f32.mrf.mxu0
        %v1593 = vadd.f32 0.0, %v1592
        %1594 = vmatmul.bf16.gmra.mxu0 %v1498
        %v1595 = vpop.f32.mrf.mxu0
        %v1596 = vadd.f32 0.0, %v1595
        %v1597 = vpop.f32.mrf.mxu0
        %v1598 = vadd.f32 0.0, %v1597
        %1599 = vmatmul.bf16.gmra.mxu0 %v1499
        %v1600 = vpop.f32.mrf.mxu0
        %v1601 = vadd.f32 0.0, %v1600
        %v1602 = vpop.f32.mrf.mxu0
        %v1603 = vadd.f32 0.0, %v1602
        %1604 = vdwg.mxu0
        %v1605 = vadd.f32 %v1251, %v1421
        %v1606 = vadd.f32 %v1252, %v1423
        %v1607 = vadd.f32 %v1253, %v1426
        %v1608 = vadd.f32 %v1254, %v1428
        %v1609 = vadd.f32 %v1255, %v1431
        %v1610 = vadd.f32 %v1256, %v1433
        %v1611 = vadd.f32 %v1257, %v1436
        %v1612 = vadd.f32 %v1258, %v1438
        %v1613 = vadd.f32 %v1259, %v1441
        %v1614 = vadd.f32 %v1260, %v1443
        %v1615 = vadd.f32 %v1261, %v1446
        %v1616 = vadd.f32 %v1262, %v1448
        %v1617 = vadd.f32 %v1263, %v1451
        %v1618 = vadd.f32 %v1264, %v1453
        %v1619 = vadd.f32 %v1265, %v1456
        %v1620 = vadd.f32 %v1266, %v1458
        %v1621 = vadd.f32 %v1267, %v1566
        %v1622 = vadd.f32 %v1268, %v1568
        %v1623 = vadd.f32 %v1269, %v1571
        %v1624 = vadd.f32 %v1270, %v1573
        %v1625 = vadd.f32 %v1271, %v1576
        %v1626 = vadd.f32 %v1272, %v1578
        %v1627 = vadd.f32 %v1273, %v1581
        %v1628 = vadd.f32 %v1274, %v1583
        %v1629 = vadd.f32 %v1275, %v1586
        %v1630 = vadd.f32 %v1276, %v1588
        %v1631 = vadd.f32 %v1277, %v1591
        %v1632 = vadd.f32 %v1278, %v1593
        %v1633 = vadd.f32 %v1279, %v1596
        %v1634 = vadd.f32 %v1280, %v1598
        %v1635 = vadd.f32 %v1281, %v1601
        %v1636 = vadd.f32 %v1282, %v1603
        %vm1637 = vcmask 261120
        %1638 = vst.msk [vmem:[#allocation2] sm:$0xff] %vm1637, %v1605
        %1639 = vst.msk [vmem:[#allocation2 + $0x8] sm:$0xff] %vm1637, %v1606
        %1640 = vst.msk [vmem:[#allocation2 + $0x10] sm:$0xff] %vm1637, %v1607
        %1641 = vst.msk [vmem:[#allocation2 + $0x18] sm:$0xff] %vm1637, %v1608
        %1642 = vst.msk [vmem:[#allocation2 + $0x20] sm:$0xff] %vm1637, %v1609
        %1643 = vst.msk [vmem:[#allocation2 + $0x28] sm:$0xff] %vm1637, %v1610
        %1644 = vst.msk [vmem:[#allocation2 + $0x30] sm:$0xff] %vm1637, %v1611
        %1645 = vst.msk [vmem:[#allocation2 + $0x38] sm:$0xff] %vm1637, %v1612
        %1646 = vst.msk [vmem:[#allocation2 + $0x40] sm:$0xff] %vm1637, %v1613
        %1647 = vst.msk [vmem:[#allocation2 + $0x48] sm:$0xff] %vm1637, %v1614
        %1648 = vst.msk [vmem:[#allocation2 + $0x50] sm:$0xff] %vm1637, %v1615
        %1649 = vst.msk [vmem:[#allocation2 + $0x58] sm:$0xff] %vm1637, %v1616
        %1650 = vst.msk [vmem:[#allocation2 + $0x60] sm:$0xff] %vm1637, %v1617
        %1651 = vst.msk [vmem:[#allocation2 + $0x68] sm:$0xff] %vm1637, %v1618
        %1652 = vst.msk [vmem:[#allocation2 + $0x70] sm:$0xff] %vm1637, %v1619
        %1653 = vst.msk [vmem:[#allocation2 + $0x78] sm:$0xff] %vm1637, %v1620
        %1654 = vst.msk [vmem:[#allocation2 + $0x80] sm:$0xff] %vm1637, %v1621
        %1655 = vst.msk [vmem:[#allocation2 + $0x88] sm:$0xff] %vm1637, %v1622
        %1656 = vst.msk [vmem:[#allocation2 + $0x90] sm:$0xff] %vm1637, %v1623
        %1657 = vst.msk [vmem:[#allocation2 + $0x98] sm:$0xff] %vm1637, %v1624
        %1658 = vst.msk [vmem:[#allocation2 + $0xa0] sm:$0xff] %vm1637, %v1625
        %1659 = vst.msk [vmem:[#allocation2 + $0xa8] sm:$0xff] %vm1637, %v1626
        %1660 = vst.msk [vmem:[#allocation2 + $0xb0] sm:$0xff] %vm1637, %v1627
        %1661 = vst.msk [vmem:[#allocation2 + $0xb8] sm:$0xff] %vm1637, %v1628
        %1662 = vst.msk [vmem:[#allocation2 + $0xc0] sm:$0xff] %vm1637, %v1629
        %1663 = vst.msk [vmem:[#allocation2 + $0xc8] sm:$0xff] %vm1637, %v1630
        %1664 = vst.msk [vmem:[#allocation2 + $0xd0] sm:$0xff] %vm1637, %v1631
        %1665 = vst.msk [vmem:[#allocation2 + $0xd8] sm:$0xff] %vm1637, %v1632
        %1666 = vst.msk [vmem:[#allocation2 + $0xe0] sm:$0xff] %vm1637, %v1633
        %1667 = vst.msk [vmem:[#allocation2 + $0xe8] sm:$0xff] %vm1637, %v1634
        %1668 = vst.msk [vmem:[#allocation2 + $0xf0] sm:$0xff] %vm1637, %v1635
        %1669 = vst.msk [vmem:[#allocation2 + $0xf8] sm:$0xff] %vm1637, %v1636
        %p1670 = scmp.eq.s32.totalorder %s30, 1
        // Predicated region
        $region206: #{tpu_custom_call.1} parent=184 // pred_check
          %p1671 = pneg %p1670
        $region207: #{tpu_custom_call.1} parent=184 // pred_check_branch
          %1673 = sbr.rel (%p1671) target = $region209
        $region208: #{tpu_custom_call.1} parent=184 // pred_region
          %s1674 = sld [smem:[#allocation3]]
          %v1675 = vld [vmem:[#allocation2] sm:$0xff]
          %v1676 = vld [vmem:[#allocation2 + $0x8] sm:$0xff]
          %v1677 = vld [vmem:[#allocation2 + $0x10] sm:$0xff]
          %v1678 = vld [vmem:[#allocation2 + $0x18] sm:$0xff]
          %v1679 = vld [vmem:[#allocation2 + $0x20] sm:$0xff]
          %v1680 = vld [vmem:[#allocation2 + $0x28] sm:$0xff]
          %v1681 = vld [vmem:[#allocation2 + $0x30] sm:$0xff]
          %v1682 = vld [vmem:[#allocation2 + $0x38] sm:$0xff]
          %v1683 = vld [vmem:[#allocation2 + $0x40] sm:$0xff]
          %v1684 = vld [vmem:[#allocation2 + $0x48] sm:$0xff]
          %v1685 = vld [vmem:[#allocation2 + $0x50] sm:$0xff]
          %v1686 = vld [vmem:[#allocation2 + $0x58] sm:$0xff]
          %v1687 = vld [vmem:[#allocation2 + $0x60] sm:$0xff]
          %v1688 = vld [vmem:[#allocation2 + $0x68] sm:$0xff]
          %v1689 = vld [vmem:[#allocation2 + $0x70] sm:$0xff]
          %v1690 = vld [vmem:[#allocation2 + $0x78] sm:$0xff]
          %1691 = vxpose.xlu0.b32.start [1/16] %v1675, 128
          %1692 = vxpose.xlu0.b32.cont [2/16] %v1676, 128
          %1693 = vxpose.xlu0.b32.cont [3/16] %v1677, 128
          %1694 = vxpose.xlu0.b32.cont [4/16] %v1678, 128
          %1695 = vxpose.xlu0.b32.cont [5/16] %v1679, 128
          %1696 = vxpose.xlu0.b32.cont [6/16] %v1680, 128
          %1697 = vxpose.xlu0.b32.cont [7/16] %v1681, 128
          %1698 = vxpose.xlu0.b32.cont [8/16] %v1682, 128
          %1699 = vxpose.xlu0.b32.cont [9/16] %v1683, 128
          %1700 = vxpose.xlu0.b32.cont [10/16] %v1684, 128
          %1701 = vxpose.xlu0.b32.cont [11/16] %v1685, 128
          %1702 = vxpose.xlu0.b32.cont [12/16] %v1686, 128
          %1703 = vxpose.xlu0.b32.cont [13/16] %v1687, 128
          %1704 = vxpose.xlu0.b32.cont [14/16] %v1688, 128
          %1705 = vxpose.xlu0.b32.cont [15/16] %v1689, 128
          %1706 = vxpose.xlu0.b32.end [16/16] %v1690, 128
          %v1707 = vpop.trf.xlu0
          %v1708 = vpop.trf.xlu0
          %v1709 = vpop.trf.xlu0
          %v1710 = vpop.trf.xlu0
          %v1711 = vpop.trf.xlu0
          %v1712 = vpop.trf.xlu0
          %v1713 = vpop.trf.xlu0
          %v1714 = vpop.trf.xlu0
          %v1715 = vpop.trf.xlu0
          %v1716 = vpop.trf.xlu0
          %v1717 = vpop.trf.xlu0
          %v1718 = vpop.trf.xlu0
          %v1719 = vpop.trf.xlu0
          %v1720 = vpop.trf.xlu0
          %v1721 = vpop.trf.xlu0
          %v1722 = vpop.trf.xlu0
          %v1723 = vstv %s1674
          %v1724 = vmul.f32 %v1723, %v1707
          %v1725 = vmul.f32 %v1723, %v1708
          %v1726 = vmul.f32 %v1723, %v1709
          %v1727 = vmul.f32 %v1723, %v1710
          %v1728 = vld [vmem:[%s738] sm:$0xff]
          %v1729 = vld [vmem:[%s738 + $0x8] sm:$0xff]
          %v1730 = vld [vmem:[%s738 + $0x10] sm:$0xff]
          %v1731 = vld [vmem:[%s738 + $0x18] sm:$0xff]
          %v1732 = vadd.f32 %v1724, %v1728
          %v1733 = vadd.f32 %v1725, %v1729
          %v1734 = vadd.f32 %v1726, %v1730
          %v1735 = vadd.f32 %v1727, %v1731
          %1736 = vst [vmem:[%s774] sm:$0xff] %v1732
          %1737 = vst [vmem:[%s774 + $0x8] sm:$0xff] %v1733
          %1738 = vst [vmem:[%s774 + $0x10] sm:$0xff] %v1734
          %1739 = vst [vmem:[%s774 + $0x18] sm:$0xff] %v1735
          %s1740 = scalar_lea.vmem [#allocation2], 128
          %v1741 = vld [vmem:[%s1740] sm:$0xff]
          %v1742 = vld [vmem:[%s1740 + $0x8] sm:$0xff]
          %v1743 = vld [vmem:[%s1740 + $0x10] sm:$0xff]
          %v1744 = vld [vmem:[%s1740 + $0x18] sm:$0xff]
          %v1745 = vld [vmem:[%s1740 + $0x20] sm:$0xff]
          %v1746 = vld [vmem:[%s1740 + $0x28] sm:$0xff]
          %v1747 = vld [vmem:[%s1740 + $0x30] sm:$0xff]
          %v1748 = vld [vmem:[%s1740 + $0x38] sm:$0xff]
          %v1749 = vld [vmem:[%s1740 + $0x40] sm:$0xff]
          %v1750 = vld [vmem:[%s1740 + $0x48] sm:$0xff]
          %v1751 = vld [vmem:[%s1740 + $0x50] sm:$0xff]
          %v1752 = vld [vmem:[%s1740 + $0x58] sm:$0xff]
          %v1753 = vld [vmem:[%s1740 + $0x60] sm:$0xff]
          %v1754 = vld [vmem:[%s1740 + $0x68] sm:$0xff]
          %v1755 = vld [vmem:[%s1740 + $0x70] sm:$0xff]
          %v1756 = vld [vmem:[%s1740 + $0x78] sm:$0xff]
          %1757 = vxpose.xlu0.b32.start [1/16] %v1741, 128
          %1758 = vxpose.xlu0.b32.cont [2/16] %v1742, 128
          %1759 = vxpose.xlu0.b32.cont [3/16] %v1743, 128
          %1760 = vxpose.xlu0.b32.cont [4/16] %v1744, 128
          %1761 = vxpose.xlu0.b32.cont [5/16] %v1745, 128
          %1762 = vxpose.xlu0.b32.cont [6/16] %v1746, 128
          %1763 = vxpose.xlu0.b32.cont [7/16] %v1747, 128
          %1764 = vxpose.xlu0.b32.cont [8/16] %v1748, 128
          %1765 = vxpose.xlu0.b32.cont [9/16] %v1749, 128
          %1766 = vxpose.xlu0.b32.cont [10/16] %v1750, 128
          %1767 = vxpose.xlu0.b32.cont [11/16] %v1751, 128
          %1768 = vxpose.xlu0.b32.cont [12/16] %v1752, 128
          %1769 = vxpose.xlu0.b32.cont [13/16] %v1753, 128
          %1770 = vxpose.xlu0.b32.cont [14/16] %v1754, 128
          %1771 = vxpose.xlu0.b32.cont [15/16] %v1755, 128
          %1772 = vxpose.xlu0.b32.end [16/16] %v1756, 128
          %v1773 = vpop.trf.xlu0
          %v1774 = vpop.trf.xlu0
          %v1775 = vpop.trf.xlu0
          %v1776 = vpop.trf.xlu0
          %v1777 = vpop.trf.xlu0
          %v1778 = vpop.trf.xlu0
          %v1779 = vpop.trf.xlu0
          %v1780 = vpop.trf.xlu0
          %v1781 = vpop.trf.xlu0
          %v1782 = vpop.trf.xlu0
          %v1783 = vpop.trf.xlu0
          %v1784 = vpop.trf.xlu0
          %v1785 = vpop.trf.xlu0
          %v1786 = vpop.trf.xlu0
          %v1787 = vpop.trf.xlu0
          %v1788 = vpop.trf.xlu0
          %v1789 = vmul.f32 %v1723, %v1773
          %v1790 = vmul.f32 %v1723, %v1774
          %v1791 = vmul.f32 %v1723, %v1775
          %v1792 = vmul.f32 %v1723, %v1776
          %s1793 = scalar_lea.vmem %s738, 32 [#allocation7]
          %v1794 = vld [vmem:[%s1793] sm:$0xff]
          %v1795 = vld [vmem:[%s1793 + $0x8] sm:$0xff]
          %v1796 = vld [vmem:[%s1793 + $0x10] sm:$0xff]
          %v1797 = vld [vmem:[%s1793 + $0x18] sm:$0xff]
          %v1798 = vadd.f32 %v1789, %v1794
          %v1799 = vadd.f32 %v1790, %v1795
          %v1800 = vadd.f32 %v1791, %v1796
          %v1801 = vadd.f32 %v1792, %v1797
          %s1802 = scalar_lea.vmem %s774, 32 [#allocation8]
          %1803 = vst [vmem:[%s1802] sm:$0xff] %v1798
          %1804 = vst [vmem:[%s1802 + $0x8] sm:$0xff] %v1799
          %1805 = vst [vmem:[%s1802 + $0x10] sm:$0xff] %v1800
          %1806 = vst [vmem:[%s1802 + $0x18] sm:$0xff] %v1801
        $region209: #{tpu_custom_call.1} parent=184 // pred_fallthru
          _
        %s1807 = sand.u32 %s170, 1
        %s1808 = scalar_lea.sflag [#allocation9], %s1807
        %s1809 = sand.u32 %s170, 1
        %s1810 = smul.addr %s1809, 64
        %s1811 = scalar_lea.vmem [#allocation8], %s1810
        %s1812 = sand.u32 %s198, 1
        %s1813 = scalar_lea.sflag [#allocation11], %s1812
        %s1814 = sand.u32 %s198, 1
        %s1815 = smul.addr %s1814, 128
        %s1816 = scalar_lea.vmem [#allocation10], %s1815
        // Predicated region
        $region210: #{tpu_custom_call.1} parent=184 // pred_check
          %p1817 = pneg %p180
        $region211: #{tpu_custom_call.1} parent=184 // pred_check_branch
          %1819 = sbr.rel (%p1817) target = $region213
        $region212: #{tpu_custom_call.1} parent=184 // pred_region
          %1821 = vsyncadd %s1808, 0
          %s1822 = smul.addr %s29, 8
          %s1823 = scalar_lea.hbm %s5, %s1822
          %s1824 = sshll.u32 %s1811, 4
          %s1825 = int_to_ptr.vmem [resolvable:$true] %s1824
          %s1826 = sshll.u32 %s1823, 4
          %s1827 = int_to_ptr.hbm [resolvable:$true] %s1826
          %1832 = dma.vmem_to_hbm [thread:$0]  %s1825, 1024, %s1827, %s1808, 128, 256, 8
        $region213: #{tpu_custom_call.1} parent=184 // pred_fallthru
          _
        // Predicated region
        $region214: #{tpu_custom_call.1} parent=184 // pred_check
          %p1833 = pneg %p208
        $region215: #{tpu_custom_call.1} parent=184 // pred_check_branch
          %1835 = sbr.rel (%p1833) target = $region217
        $region216: #{tpu_custom_call.1} parent=184 // pred_region
          #allocation13 [shape = 'u32[6]{0}', space=smem, size = 0x18, scoped, tag = 'DMA stride descriptor']
          %s1836 = smul.u32 16, %s29
          %1838 = vsyncadd %s1813, 0
          %s1839 = smul.addr %s1836, 2
          %s1840 = sadd.s32 %s30, %s1839
          %s1841 = smul.addr %s1840, 4
          %s1842 = scalar_lea.hbm %s6, %s1841
          %s1844 = sshll.u32 1, 14
          %s1845 = sxor.u32 4294967295, %s1844
          %s1848 = sshll.u32 7, 18
          %s1849 = sxor.u32 4294967295, %s1848
          %s1850 = sand.u32 0, %s1849
          %s1852 = sor.u32 %s1850, 0
          %s1853 = sshll.u32 %s1816, 4
          %s1854 = int_to_ptr.vmem [resolvable:$true] %s1853
          %s1855 = sshll.u32 %s1842, 4
          %s1856 = int_to_ptr.hbm [resolvable:$true] %s1855
          %1862 = sst [smem:[#allocation13]] 1024
          %s1863 = scalar_lea.smem [#allocation13], 1
          %1864 = sst [smem:[%s1863]] 4096
          %s1865 = scalar_lea.smem [#allocation13], 2
          %1866 = sst [smem:[%s1865]] 16
          %s1867 = scalar_lea.smem [#allocation13], 3
          %1868 = sst [smem:[%s1867]] 64
          %s1869 = scalar_lea.smem [#allocation13], 4
          %1870 = sst [smem:[%s1869]] 128
          %s1871 = scalar_lea.smem [#allocation13], 5
          %1872 = sst [smem:[%s1871]] 4
          %1874 = dma.general %s1854, 2048, %s1856, %s1813, [#allocation12], [#allocation13], %s1852, 0
        $region217: #{tpu_custom_call.1} parent=184 // pred_fallthru
          _
      $region185: #{tpu_custom_call.1} parent=5 // pred_fallthru
        _
      %p1875 = scmp.le.s32.totalorder 2, %s20
      // Predicated region
      $region218: #{tpu_custom_call.1} parent=5 // pred_check
        %p1876 = pneg %p1875
      $region219: #{tpu_custom_call.1} parent=5 // pred_check_branch
        %1878 = sbr.rel (%p1876) target = $region221
      $region220: #{tpu_custom_call.1} parent=5 // pred_region
        %s1879 = ssub.s32 %s20, 2
        // Predicated region
        $region222: #{tpu_custom_call.1} parent=220 // pred_check
          %p1880 = pneg %p186
        $region223: #{tpu_custom_call.1} parent=220 // pred_check_branch
          %1882 = sbr.rel (%p1880) target = $region225
        $region224: #{tpu_custom_call.1} parent=220 // pred_region
          %s1883 = sand.u32 %s171, 1
          %s1884 = scalar_lea.sflag [#allocation9], %s1883
          %s1885 = sand.u32 %s171, 1
          %s1886 = smul.addr %s1885, 64
          %s1887 = scalar_lea.vmem [#allocation8], %s1886
          %1889 = dma.done %s1884, 1024
        $region225: #{tpu_custom_call.1} parent=220 // pred_fallthru
          _
        // Predicated region
        $region226: #{tpu_custom_call.1} parent=220 // pred_check
          %p1890 = pneg %p214
        $region227: #{tpu_custom_call.1} parent=220 // pred_check_branch
          %1892 = sbr.rel (%p1890) target = $region229
        $region228: #{tpu_custom_call.1} parent=220 // pred_region
          %s1893 = sand.u32 %s199, 1
          %s1894 = scalar_lea.sflag [#allocation11], %s1893
          %s1895 = sand.u32 %s199, 1
          %s1896 = smul.addr %s1895, 128
          %s1897 = scalar_lea.vmem [#allocation10], %s1896
          %1899 = dma.done %s1894, 2048
        $region229: #{tpu_custom_call.1} parent=220 // pred_fallthru
          _
      $region221: #{tpu_custom_call.1} parent=5 // pred_fallthru
        _
    $region6: #{tpu_custom_call.1} parent=1 // loop_footer
      %s24 = sadd.s32 1, %s20
    $region7: #{tpu_custom_call.1} parent=1 // loop_footer_branch
      %19 = sbr.rel target = $region3
    $region8: #{tpu_custom_call.1} parent=1 // loop_exit
      _
    %1900 = vsyncpa [#allocation9], 1
    %s1901 = scalar_lea.sflag [#allocation9], 1
    %1902 = vsyncpa %s1901, 1
    %1903 = vsyncpa [#allocation11], 1
    %s1904 = scalar_lea.sflag [#allocation11], 1
    %1905 = vsyncpa %s1904, 1

</llo_original>
